<compile_context>
chip_gen: v5e
topology: v5e:2x2
jax: 0.10.0
libtpu: 0.0.40
codegen_flags: <defaults>
</compile_context>

<pallas_src>
import functools

import jax
import jax.numpy as jnp
from jax import lax
from jax.experimental import pallas as pl
from jax.experimental.pallas import tpu as pltpu


# ------------------------------------------------------------------ fused kernel
def _mha_fused_kernel(q_ref, k_ref, v_ref, mask_ref, wq_ref, wk_ref, wv_ref,
                      wp_ref, bp_ref, g_ref, b_ref, out_ref, *rest,
                      n_head, eps, approx, compute_dtype, return_attns):
    if return_attns:
        attn_ref, ks_sc, vs_sc = rest
    else:
        ks_sc, vs_sc = rest

    # -------- per-batch prologue: project K / V for all heads into head-major scratch.
    # Runs only at q-tile 0; the scratch persists across the q-tile ("arbitrary") axis.
    @pl.when(pl.program_id(1) == 0)
    def _():
        kc = k_ref[0].astype(compute_dtype)                          # (Lk, D)
        vc = v_ref[0].astype(compute_dtype)
        for h in range(n_head):                                      # static loop
            ks_sc[h] = jnp.dot(kc, wk_ref[h],
                               preferred_element_type=jnp.float32).astype(ks_sc.dtype)
            vs_sc[h] = jnp.dot(vc, wv_ref[h],
                               preferred_element_type=jnp.float32).astype(vs_sc.dtype)

    q = q_ref[0]                                                     # (TQ, D) f32, residual
    qc = q.astype(compute_dtype)
    # Additive finite mask; -1e30 stays finite only because scores accumulate in f32.
    mask_bias = mask_ref[0].astype(jnp.float32) * jnp.float32(-1e30)  # (TQ, Lk)

    acc = jnp.zeros((q.shape[0], out_ref.shape[-1]), jnp.float32)    # (TQ, D) proj accum
    for h in range(n_head):                                          # static unrolled loop
        # Q projection; W_q already carries 1/temperature.
        qh = jnp.dot(qc, wq_ref[h], preferred_element_type=jnp.float32)     # (TQ, d_k)
        # scores: contract last dims directly ('qd,kd->qk') -- no explicit K transpose.
        scores = lax.dot_general(qh.astype(compute_dtype), ks_sc[h],
                                 (((1,), (1,)), ((), ())),
                                 preferred_element_type=jnp.float32) + mask_bias
        m = jnp.max(scores, axis=-1, keepdims=True)
        p = jnp.exp(scores - m)
        s = jnp.sum(p, axis=-1, keepdims=True)
        attn = p * pl.reciprocal(s, approx=approx)                   # softmax over keys
        if return_attns:
            attn_ref[h, 0] = attn.astype(attn_ref.dtype)
        head_out = jnp.dot(attn.astype(compute_dtype), vs_sc[h],
                           preferred_element_type=jnp.float32)        # (TQ, d_v)
        # Output projection accumulated per head: no lane concat, bounded live ranges.
        acc = acc + jnp.dot(head_out.astype(compute_dtype), wp_ref[h],
                            preferred_element_type=jnp.float32)       # (TQ, D)

    # proj bias + residual + LayerNorm (unbiased std, eps on sigma: matches the repo).
    z = acc + bp_ref[...] + q
    d = z.shape[-1]
    mu = jnp.mean(z, axis=-1, keepdims=True)
    var = jnp.sum((z - mu) ** 2, axis=-1, keepdims=True) / (d - 1)
    inv_sigma = pl.reciprocal(jnp.sqrt(var) + eps, approx=False)     # once per row: exact
    out_ref[0] = ((z - mu) * inv_sigma * g_ref[...] + b_ref[...]).astype(out_ref.dtype)


# ------------------------------------------------------------------ wrapper
def _pick_q_tile(len_q, block_q):
    """Largest multiple-of-8 divisor of len_q not exceeding block_q (or whole len_q)."""
    if len_q <= block_q:
        return len_q
    t = (block_q // 8) * 8
    while t >= 8:
        if len_q % t == 0:
            return t
        t -= 8
    return len_q


def multi_head_attention(q, k, v, attn_mask, params, *, n_head, d_k, d_v,
                         compute_dtype=jnp.float32, return_attns=True,
                         block_q=256, attn_dtype=jnp.float32,
                         vmem_limit_bytes=48 * 1024 * 1024):
    mb, len_q, d_model = q.shape
    _, len_k, _ = k.shape
    temperature = float(d_model) ** 0.5
    eps = 1e-3
    approx = jnp.dtype(compute_dtype) == jnp.dtype(jnp.bfloat16)

    tq = _pick_q_tile(len_q, block_q)
    n_qt = len_q // tq

    # Head-major weights (in-kernel head extraction is a free leading-dim index);
    # 1/temperature folded into W_q.  Output proj is nn.Linear (x @ W.T + b):
    # W.T is (H*d_v, d_model) -> (H, d_v, d_model) head-row blocks.
    wq = (params["w_qs"] / temperature).astype(compute_dtype)            # (H, D, d_k)
    wk = params["w_ks"].astype(compute_dtype)                            # (H, D, d_k)
    wv = params["w_vs"].astype(compute_dtype)                            # (H, D, d_v)
    wp = params["w_proj"].T.reshape(n_head, d_v, d_model).astype(compute_dtype)
    bp = params["b_proj"].reshape(1, d_model).astype(jnp.float32)
    gamma = params["gamma"].reshape(1, d_model).astype(jnp.float32)
    beta = params["beta"].reshape(1, d_model).astype(jnp.float32)
    mask_bf16 = attn_mask.astype(jnp.bfloat16)   # {0,1} exact; halves O(Lq*Lk) HBM read

    in_specs = [
        pl.BlockSpec((1, tq, d_model),       lambda b, t: (b, t, 0)),    # q tile
        pl.BlockSpec((1, len_k, d_model),    lambda b, t: (b, 0, 0)),    # k (resident)
        pl.BlockSpec((1, len_k, d_model),    lambda b, t: (b, 0, 0)),    # v (resident)
        pl.BlockSpec((1, tq, len_k),         lambda b, t: (b, t, 0)),    # mask tile (bf16)
        pl.BlockSpec((n_head, d_model, d_k), lambda b, t: (0, 0, 0)),    # W_q (pre-scaled)
        pl.BlockSpec((n_head, d_model, d_k), lambda b, t: (0, 0, 0)),    # W_k
        pl.BlockSpec((n_head, d_model, d_v), lambda b, t: (0, 0, 0)),    # W_v
        pl.BlockSpec((n_head, d_v, d_model), lambda b, t: (0, 0, 0)),    # W_proj head-major
        pl.BlockSpec((1, d_model),           lambda b, t: (0, 0)),       # proj bias
        pl.BlockSpec((1, d_model),           lambda b, t: (0, 0)),       # LN gamma
        pl.BlockSpec((1, d_model),           lambda b, t: (0, 0)),       # LN beta
    ]
    out_specs = [pl.BlockSpec((1, tq, d_model), lambda b, t: (b, t, 0))]
    out_shape = [jax.ShapeDtypeStruct((mb, len_q, d_model), jnp.float32)]
    if return_attns:
        # (H, mb, Lq, Lk): reshape to (H*mb, Lq, Lk) outside is copy-free and matches the
        # torch head-major stacking (index = h*mb + b).
        out_specs.append(pl.BlockSpec((n_head, 1, tq, len_k), lambda b, t: (0, b, t, 0)))
        out_shape.append(jax.ShapeDtypeStruct((n_head, mb, len_q, len_k), attn_dtype))

    scratch_shapes = [
        pltpu.VMEM((n_head, len_k, d_k), compute_dtype),   # projected K, head-major
        pltpu.VMEM((n_head, len_k, d_v), compute_dtype),   # projected V, head-major
    ]

    outs = pl.pallas_call(
        functools.partial(_mha_fused_kernel, n_head=n_head, eps=eps, approx=approx,
                          compute_dtype=compute_dtype, return_attns=return_attns),
        grid=(mb, n_qt),
        in_specs=in_specs,
        out_specs=out_specs,
        out_shape=out_shape,
        scratch_shapes=scratch_shapes,
        compiler_params=pltpu.CompilerParams(
            dimension_semantics=("parallel", "arbitrary"),
            vmem_limit_bytes=vmem_limit_bytes),
    )(q, k, v, mask_bf16, wq, wk, wv, wp, bp, gamma, beta)

    if return_attns:
        out, attn4 = outs
        return out, attn4.reshape(n_head * mb, len_q, len_k)
    return outs[0]


# ------------------------------------------------------------------ pure-JAX reference
def _reference(q, k, v, mask, params, *, n_head, d_k, d_v):
    mb, len_q, d_model = q.shape
    _, len_k, _ = k.shape
    temper = float(d_model) ** 0.5
    eps = 1e-3

    q_s = jnp.einsum("bld,hde->hble", q, params["w_qs"]).reshape(n_head * mb, len_q, d_k)
    k_s = jnp.einsum("bld,hde->hble", k, params["w_ks"]).reshape(n_head * mb, len_k, d_k)
    v_s = jnp.einsum("bld,hde->hble", v, params["w_vs"]).reshape(n_head * mb, len_k, d_v)

    scores = jnp.einsum("nqe,nke->nqk", q_s, k_s) / temper
    mask_rep = jnp.tile(mask, (n_head, 1, 1))
    scores = jnp.where(mask_rep > 0, -jnp.inf, scores)
    attn = jax.nn.softmax(scores, axis=-1)
    out = jnp.einsum("nqk,nkv->nqv", attn, v_s)

    out = out.reshape(n_head, mb, len_q, d_v).transpose(1, 2, 0, 3).reshape(mb, len_q, n_head * d_v)
    out = out @ params["w_proj"].T + params["b_proj"]
    z = out + q
    mu = jnp.mean(z, axis=-1, keepdims=True)
    var = jnp.sum((z - mu) ** 2, axis=-1, keepdims=True) / (d_model - 1)
    ln = (z - mu) / (jnp.sqrt(var) + eps)
    return ln * params["gamma"] + params["beta"], attn


# ------------------------------------------------------------------ main
if __name__ == "__main__":
    n_head, d_model, d_k, d_v = 4, 32, 8, 8
    mb, seq = 2, 16

    key = jax.random.PRNGKey(0)
    ks = jax.random.split(key, 8)

    def xavier(kk, shape, fan_in, fan_out):
        std = (2.0 / (fan_in + fan_out)) ** 0.5
        return std * jax.random.normal(kk, shape, dtype=jnp.float32)

    params = {
        "w_qs": xavier(ks[0], (n_head, d_model, d_k), d_model * d_k, n_head * d_k),
        "w_ks": xavier(ks[1], (n_head, d_model, d_k), d_model * d_k, n_head * d_k),
        "w_vs": xavier(ks[2], (n_head, d_model, d_v), d_model * d_v, n_head * d_v),
        "w_proj": xavier(ks[3], (d_model, n_head * d_v), n_head * d_v, d_model),
        "b_proj": jnp.zeros((d_model,), jnp.float32),
        "gamma": jnp.ones((d_model,), jnp.float32),
        "beta": jnp.zeros((d_model,), jnp.float32),
    }

    q = jax.random.normal(ks[4], (mb, seq, d_model), dtype=jnp.float32)
    k = jax.random.normal(ks[5], (mb, seq, d_model), dtype=jnp.float32)
    v = jax.random.normal(ks[6], (mb, seq, d_model), dtype=jnp.float32)

    # mask: batch 1 masks its last 2 key positions (1.0 == masked); no row fully masked.
    attn_mask = jnp.zeros((mb, seq, seq), jnp.float32)
    attn_mask = attn_mask.at[1, :, -2:].set(1.0)

    ref_out, ref_attn = _reference(q, k, v, attn_mask, params,
                                   n_head=n_head, d_k=d_k, d_v=d_v)

    # ---- f32 path, block_q=8 forces 2 q-tiles per batch (exercises tiling + K/V scratch reuse)
    out, attns = multi_head_attention(q, k, v, attn_mask, params,
                                      n_head=n_head, d_k=d_k, d_v=d_v, block_q=8)
    out = jax.block_until_ready(out)
    attns = jax.block_until_ready(attns)
    assert out.shape == (mb, seq, d_model)
    assert attns.shape == (n_head * mb, seq, seq)
    assert jnp.allclose(out, ref_out, rtol=2e-5, atol=2e-5)
    assert jnp.allclose(attns, ref_attn, rtol=2e-5, atol=2e-5)

    # ---- bf16 MXU hot path, attention probabilities skipped, whole-Lq tile ----
    out_fast = multi_head_attention(q, k, v, attn_mask, params,
                                    n_head=n_head, d_k=d_k, d_v=d_v,
                                    compute_dtype=jnp.bfloat16, return_attns=False)
    out_fast = jax.block_until_ready(out_fast)
    assert out_fast.shape == (mb, seq, d_model)
    assert bool(jnp.all(jnp.isfinite(out_fast)))
    assert jnp.allclose(out_fast, ref_out, rtol=1e-1, atol=1e-1)

    print("KERNEL_OK")
</pallas_src>

<mosaic_0001>
module attributes {stable_mosaic.version = 11 : i64} {
  func.func @_mha_fused_kernel(%arg0: i32, %arg1: i32, %arg2: memref<1x8x32xf32, #tpu.memory_space<vmem>>, %arg3: memref<1x16x32xf32, #tpu.memory_space<vmem>>, %arg4: memref<1x16x32xf32, #tpu.memory_space<vmem>>, %arg5: memref<1x8x16xbf16, #tpu.memory_space<vmem>>, %arg6: memref<4x32x8xf32, #tpu.memory_space<vmem>>, %arg7: memref<4x32x8xf32, #tpu.memory_space<vmem>>, %arg8: memref<4x32x8xf32, #tpu.memory_space<vmem>>, %arg9: memref<4x8x32xf32, #tpu.memory_space<vmem>>, %arg10: memref<1x32xf32, #tpu.memory_space<vmem>>, %arg11: memref<1x32xf32, #tpu.memory_space<vmem>>, %arg12: memref<1x32xf32, #tpu.memory_space<vmem>>, %arg13: memref<1x8x32xf32, #tpu.memory_space<vmem>>, %arg14: memref<4x1x8x16xf32, #tpu.memory_space<vmem>>, %arg15: memref<4x16x8xf32, #tpu.memory_space<vmem>>, %arg16: memref<4x16x8xf32, #tpu.memory_space<vmem>>) attributes {dimension_semantics = [#tpu.dimension_semantics<parallel>, #tpu.dimension_semantics<arbitrary>], iteration_bounds = array<i64: 2, 2>, scalar_prefetch = 0 : i64, scratch_operands = 2 : i64, tpu.core_type = #tpu.core_type<tc>, window_params = [{transform_indices = @transform_0, window_bounds = array<i64: 1, 8, 32>}, {transform_indices = @transform_1, window_bounds = array<i64: 1, 16, 32>}, {transform_indices = @transform_2, window_bounds = array<i64: 1, 16, 32>}, {transform_indices = @transform_3, window_bounds = array<i64: 1, 8, 16>}, {pipeline_mode = #tpu.pipeline_mode<synchronous>, transform_indices = @transform_4, window_bounds = array<i64: 4, 32, 8>}, {pipeline_mode = #tpu.pipeline_mode<synchronous>, transform_indices = @transform_5, window_bounds = array<i64: 4, 32, 8>}, {pipeline_mode = #tpu.pipeline_mode<synchronous>, transform_indices = @transform_6, window_bounds = array<i64: 4, 32, 8>}, {pipeline_mode = #tpu.pipeline_mode<synchronous>, transform_indices = @transform_7, window_bounds = array<i64: 4, 8, 32>}, {pipeline_mode = #tpu.pipeline_mode<synchronous>, transform_indices = @transform_8, window_bounds = array<i64: 1, 32>}, {pipeline_mode = #tpu.pipeline_mode<synchronous>, transform_indices = @transform_9, window_bounds = array<i64: 1, 32>}, {pipeline_mode = #tpu.pipeline_mode<synchronous>, transform_indices = @transform_10, window_bounds = array<i64: 1, 32>}, {transform_indices = @transform_11, window_bounds = array<i64: 1, 8, 32>}, {transform_indices = @transform_12, window_bounds = array<i64: 4, 1, 8, 16>}]} {
    %c0_i32 = arith.constant 0 : i32
    %0 = arith.cmpi eq, %arg1, %c0_i32 : i32
    %1 = arith.extui %0 : i1 to i32
    %c0_i32_0 = arith.constant 0 : i32
    %2 = arith.cmpi ne, %1, %c0_i32_0 : i32
    scf.if %2 {
      %c0_106 = arith.constant 0 : index
      %c0_107 = arith.constant 0 : index
      %c0_108 = arith.constant 0 : index
      %151 = vector.load %arg3[%c0_106, %c0_107, %c0_108] : memref<1x16x32xf32, #tpu.memory_space<vmem>>, vector<1x16x32xf32>
      %152 = vector.shape_cast %151 : vector<1x16x32xf32> to vector<16x32xf32>
      %c0_109 = arith.constant 0 : index
      %c0_110 = arith.constant 0 : index
      %c0_111 = arith.constant 0 : index
      %153 = vector.load %arg4[%c0_109, %c0_110, %c0_111] : memref<1x16x32xf32, #tpu.memory_space<vmem>>, vector<1x16x32xf32>
      %154 = vector.shape_cast %153 : vector<1x16x32xf32> to vector<16x32xf32>
      %c0_112 = arith.constant 0 : index
      %c0_113 = arith.constant 0 : index
      %c0_114 = arith.constant 0 : index
      %155 = vector.load %arg7[%c0_112, %c0_113, %c0_114] : memref<4x32x8xf32, #tpu.memory_space<vmem>>, vector<1x32x8xf32>
      %156 = vector.shape_cast %155 : vector<1x32x8xf32> to vector<32x8xf32>
      %cst_115 = arith.constant dense<0.000000e+00> : vector<16x8xf32>
      %157 = tpu.matmul %152, %156, %cst_115 {dimension_numbers = #tpu.dot_dimension_numbers<[1], [0], [0], [1], [0, 0, 1, 1], [], []>} : vector<16x32xf32>, vector<32x8xf32>, vector<16x8xf32> -> vector<16x8xf32>
      %c0_116 = arith.constant 0 : index
      %c0_117 = arith.constant 0 : index
      %c0_118 = arith.constant 0 : index
      %158 = vector.load %arg15[%c0_116, %c0_117, %c0_118] : memref<4x16x8xf32, #tpu.memory_space<vmem>>, vector<1x16x8xf32>
      %159 = vector.shape_cast %158 : vector<1x16x8xf32> to vector<16x8xf32>
      %160 = vector.shape_cast %157 : vector<16x8xf32> to vector<1x16x8xf32>
      tpu.vector_store %arg15[%c0_116, %c0_117, %c0_118], %160 {strides = array<i32>} : memref<4x16x8xf32, #tpu.memory_space<vmem>>, vector<1x16x8xf32>,
      %c0_119 = arith.constant 0 : index
      %c0_120 = arith.constant 0 : index
      %c0_121 = arith.constant 0 : index
      %161 = vector.load %arg8[%c0_119, %c0_120, %c0_121] : memref<4x32x8xf32, #tpu.memory_space<vmem>>, vector<1x32x8xf32>
      %162 = vector.shape_cast %161 : vector<1x32x8xf32> to vector<32x8xf32>
      %cst_122 = arith.constant dense<0.000000e+00> : vector<16x8xf32>
      %163 = tpu.matmul %154, %162, %cst_122 {dimension_numbers = #tpu.dot_dimension_numbers<[1], [0], [0], [1], [0, 0, 1, 1], [], []>} : vector<16x32xf32>, vector<32x8xf32>, vector<16x8xf32> -> vector<16x8xf32>
      %c0_123 = arith.constant 0 : index
      %c0_124 = arith.constant 0 : index
      %c0_125 = arith.constant 0 : index
      %164 = vector.load %arg16[%c0_123, %c0_124, %c0_125] : memref<4x16x8xf32, #tpu.memory_space<vmem>>, vector<1x16x8xf32>
      %165 = vector.shape_cast %164 : vector<1x16x8xf32> to vector<16x8xf32>
      %166 = vector.shape_cast %163 : vector<16x8xf32> to vector<1x16x8xf32>
      tpu.vector_store %arg16[%c0_123, %c0_124, %c0_125], %166 {strides = array<i32>} : memref<4x16x8xf32, #tpu.memory_space<vmem>>, vector<1x16x8xf32>,
      %c1_126 = arith.constant 1 : index
      %c0_127 = arith.constant 0 : index
      %c0_128 = arith.constant 0 : index
      %167 = vector.load %arg7[%c1_126, %c0_127, %c0_128] : memref<4x32x8xf32, #tpu.memory_space<vmem>>, vector<1x32x8xf32>
      %168 = vector.shape_cast %167 : vector<1x32x8xf32> to vector<32x8xf32>
      %cst_129 = arith.constant dense<0.000000e+00> : vector<16x8xf32>
      %169 = tpu.matmul %152, %168, %cst_129 {dimension_numbers = #tpu.dot_dimension_numbers<[1], [0], [0], [1], [0, 0, 1, 1], [], []>} : vector<16x32xf32>, vector<32x8xf32>, vector<16x8xf32> -> vector<16x8xf32>
      %c1_130 = arith.constant 1 : index
      %c0_131 = arith.constant 0 : index
      %c0_132 = arith.constant 0 : index
      %170 = vector.load %arg15[%c1_130, %c0_131, %c0_132] : memref<4x16x8xf32, #tpu.memory_space<vmem>>, vector<1x16x8xf32>
      %171 = vector.shape_cast %170 : vector<1x16x8xf32> to vector<16x8xf32>
      %172 = vector.shape_cast %169 : vector<16x8xf32> to vector<1x16x8xf32>
      tpu.vector_store %arg15[%c1_130, %c0_131, %c0_132], %172 {strides = array<i32>} : memref<4x16x8xf32, #tpu.memory_space<vmem>>, vector<1x16x8xf32>,
      %c1_133 = arith.constant 1 : index
      %c0_134 = arith.constant 0 : index
      %c0_135 = arith.constant 0 : index
      %173 = vector.load %arg8[%c1_133, %c0_134, %c0_135] : memref<4x32x8xf32, #tpu.memory_space<vmem>>, vector<1x32x8xf32>
      %174 = vector.shape_cast %173 : vector<1x32x8xf32> to vector<32x8xf32>
      %cst_136 = arith.constant dense<0.000000e+00> : vector<16x8xf32>
      %175 = tpu.matmul %154, %174, %cst_136 {dimension_numbers = #tpu.dot_dimension_numbers<[1], [0], [0], [1], [0, 0, 1, 1], [], []>} : vector<16x32xf32>, vector<32x8xf32>, vector<16x8xf32> -> vector<16x8xf32>
      %c1_137 = arith.constant 1 : index
      %c0_138 = arith.constant 0 : index
      %c0_139 = arith.constant 0 : index
      %176 = vector.load %arg16[%c1_137, %c0_138, %c0_139] : memref<4x16x8xf32, #tpu.memory_space<vmem>>, vector<1x16x8xf32>
      %177 = vector.shape_cast %176 : vector<1x16x8xf32> to vector<16x8xf32>
      %178 = vector.shape_cast %175 : vector<16x8xf32> to vector<1x16x8xf32>
      tpu.vector_store %arg16[%c1_137, %c0_138, %c0_139], %178 {strides = array<i32>} : memref<4x16x8xf32, #tpu.memory_space<vmem>>, vector<1x16x8xf32>,
      %c2_140 = arith.constant 2 : index
      %c0_141 = arith.constant 0 : index
      %c0_142 = arith.constant 0 : index
      %179 = vector.load %arg7[%c2_140, %c0_141, %c0_142] : memref<4x32x8xf32, #tpu.memory_space<vmem>>, vector<1x32x8xf32>
      %180 = vector.shape_cast %179 : vector<1x32x8xf32> to vector<32x8xf32>
      %cst_143 = arith.constant dense<0.000000e+00> : vector<16x8xf32>
      %181 = tpu.matmul %152, %180, %cst_143 {dimension_numbers = #tpu.dot_dimension_numbers<[1], [0], [0], [1], [0, 0, 1, 1], [], []>} : vector<16x32xf32>, vector<32x8xf32>, vector<16x8xf32> -> vector<16x8xf32>
      %c2_144 = arith.constant 2 : index
      %c0_145 = arith.constant 0 : index
      %c0_146 = arith.constant 0 : index
      %182 = vector.load %arg15[%c2_144, %c0_145, %c0_146] : memref<4x16x8xf32, #tpu.memory_space<vmem>>, vector<1x16x8xf32>
      %183 = vector.shape_cast %182 : vector<1x16x8xf32> to vector<16x8xf32>
      %184 = vector.shape_cast %181 : vector<16x8xf32> to vector<1x16x8xf32>
      tpu.vector_store %arg15[%c2_144, %c0_145, %c0_146], %184 {strides = array<i32>} : memref<4x16x8xf32, #tpu.memory_space<vmem>>, vector<1x16x8xf32>,
      %c2_147 = arith.constant 2 : index
      %c0_148 = arith.constant 0 : index
      %c0_149 = arith.constant 0 : index
      %185 = vector.load %arg8[%c2_147, %c0_148, %c0_149] : memref<4x32x8xf32, #tpu.memory_space<vmem>>, vector<1x32x8xf32>
      %186 = vector.shape_cast %185 : vector<1x32x8xf32> to vector<32x8xf32>
      %cst_150 = arith.constant dense<0.000000e+00> : vector<16x8xf32>
      %187 = tpu.matmul %154, %186, %cst_150 {dimension_numbers = #tpu.dot_dimension_numbers<[1], [0], [0], [1], [0, 0, 1, 1], [], []>} : vector<16x32xf32>, vector<32x8xf32>, vector<16x8xf32> -> vector<16x8xf32>
      %c2_151 = arith.constant 2 : index
      %c0_152 = arith.constant 0 : index
      %c0_153 = arith.constant 0 : index
      %188 = vector.load %arg16[%c2_151, %c0_152, %c0_153] : memref<4x16x8xf32, #tpu.memory_space<vmem>>, vector<1x16x8xf32>
      %189 = vector.shape_cast %188 : vector<1x16x8xf32> to vector<16x8xf32>
      %190 = vector.shape_cast %187 : vector<16x8xf32> to vector<1x16x8xf32>
      tpu.vector_store %arg16[%c2_151, %c0_152, %c0_153], %190 {strides = array<i32>} : memref<4x16x8xf32, #tpu.memory_space<vmem>>, vector<1x16x8xf32>,
      %c3_154 = arith.constant 3 : index
      %c0_155 = arith.constant 0 : index
      %c0_156 = arith.constant 0 : index
      %191 = vector.load %arg7[%c3_154, %c0_155, %c0_156] : memref<4x32x8xf32, #tpu.memory_space<vmem>>, vector<1x32x8xf32>
      %192 = vector.shape_cast %191 : vector<1x32x8xf32> to vector<32x8xf32>
      %cst_157 = arith.constant dense<0.000000e+00> : vector<16x8xf32>
      %193 = tpu.matmul %152, %192, %cst_157 {dimension_numbers = #tpu.dot_dimension_numbers<[1], [0], [0], [1], [0, 0, 1, 1], [], []>} : vector<16x32xf32>, vector<32x8xf32>, vector<16x8xf32> -> vector<16x8xf32>
      %c3_158 = arith.constant 3 : index
      %c0_159 = arith.constant 0 : index
      %c0_160 = arith.constant 0 : index
      %194 = vector.load %arg15[%c3_158, %c0_159, %c0_160] : memref<4x16x8xf32, #tpu.memory_space<vmem>>, vector<1x16x8xf32>
      %195 = vector.shape_cast %194 : vector<1x16x8xf32> to vector<16x8xf32>
      %196 = vector.shape_cast %193 : vector<16x8xf32> to vector<1x16x8xf32>
      tpu.vector_store %arg15[%c3_158, %c0_159, %c0_160], %196 {strides = array<i32>} : memref<4x16x8xf32, #tpu.memory_space<vmem>>, vector<1x16x8xf32>,
      %c3_161 = arith.constant 3 : index
      %c0_162 = arith.constant 0 : index
      %c0_163 = arith.constant 0 : index
      %197 = vector.load %arg8[%c3_161, %c0_162, %c0_163] : memref<4x32x8xf32, #tpu.memory_space<vmem>>, vector<1x32x8xf32>
      %198 = vector.shape_cast %197 : vector<1x32x8xf32> to vector<32x8xf32>
      %cst_164 = arith.constant dense<0.000000e+00> : vector<16x8xf32>
      %199 = tpu.matmul %154, %198, %cst_164 {dimension_numbers = #tpu.dot_dimension_numbers<[1], [0], [0], [1], [0, 0, 1, 1], [], []>} : vector<16x32xf32>, vector<32x8xf32>, vector<16x8xf32> -> vector<16x8xf32>
      %c3_165 = arith.constant 3 : index
      %c0_166 = arith.constant 0 : index
      %c0_167 = arith.constant 0 : index
      %200 = vector.load %arg16[%c3_165, %c0_166, %c0_167] : memref<4x16x8xf32, #tpu.memory_space<vmem>>, vector<1x16x8xf32>
      %201 = vector.shape_cast %200 : vector<1x16x8xf32> to vector<16x8xf32>
      %202 = vector.shape_cast %199 : vector<16x8xf32> to vector<1x16x8xf32>
      tpu.vector_store %arg16[%c3_165, %c0_166, %c0_167], %202 {strides = array<i32>} : memref<4x16x8xf32, #tpu.memory_space<vmem>>, vector<1x16x8xf32>,
    } else {
    }
    %c0 = arith.constant 0 : index
    %c0_1 = arith.constant 0 : index
    %c0_2 = arith.constant 0 : index
    %3 = vector.load %arg2[%c0, %c0_1, %c0_2] : memref<1x8x32xf32, #tpu.memory_space<vmem>>, vector<1x8x32xf32>
    %4 = vector.shape_cast %3 : vector<1x8x32xf32> to vector<8x32xf32>
    %c0_3 = arith.constant 0 : index
    %c0_4 = arith.constant 0 : index
    %c0_5 = arith.constant 0 : index
    %5 = vector.load %arg5[%c0_3, %c0_4, %c0_5] : memref<1x8x16xbf16, #tpu.memory_space<vmem>>, vector<1x8x16xbf16>
    %6 = vector.shape_cast %5 : vector<1x8x16xbf16> to vector<8x16xbf16>
    %7 = arith.extf %6 : vector<8x16xbf16> to vector<8x16xf32>
    %cst = arith.constant -1.000000e+30 : f32
    %8 = vector.broadcast %cst : f32 to vector<8x16xf32>
    %9 = arith.mulf %7, %8 : vector<8x16xf32>
    %cst_6 = arith.constant 0.000000e+00 : f32
    %10 = vector.broadcast %cst_6 : f32 to vector<8x32xf32>
    %c0_7 = arith.constant 0 : index
    %c0_8 = arith.constant 0 : index
    %c0_9 = arith.constant 0 : index
    %11 = vector.load %arg6[%c0_7, %c0_8, %c0_9] : memref<4x32x8xf32, #tpu.memory_space<vmem>>, vector<1x32x8xf32>
    %12 = vector.shape_cast %11 : vector<1x32x8xf32> to vector<32x8xf32>
    %cst_10 = arith.constant dense<0.000000e+00> : vector<8x8xf32>
    %13 = tpu.matmul %4, %12, %cst_10 {dimension_numbers = #tpu.dot_dimension_numbers<[1], [0], [0], [1], [0, 0, 1, 1], [], []>} : vector<8x32xf32>, vector<32x8xf32>, vector<8x8xf32> -> vector<8x8xf32>
    %c0_11 = arith.constant 0 : index
    %c0_12 = arith.constant 0 : index
    %c0_13 = arith.constant 0 : index
    %14 = vector.load %arg15[%c0_11, %c0_12, %c0_13] : memref<4x16x8xf32, #tpu.memory_space<vmem>>, vector<1x16x8xf32>
    %15 = vector.shape_cast %14 : vector<1x16x8xf32> to vector<16x8xf32>
    %cst_14 = arith.constant dense<0.000000e+00> : vector<8x16xf32>
    %16 = tpu.matmul %13, %15, %cst_14 {dimension_numbers = #tpu.dot_dimension_numbers<[1], [1], [0], [0], [0, 0, 1, 0], [], []>} : vector<8x8xf32>, vector<16x8xf32>, vector<8x16xf32> -> vector<8x16xf32>
    %17 = arith.addf %16, %9 : vector<8x16xf32>
    %cst_15 = arith.constant dense<0xFF800000> : vector<8xf32>
    %18 = vector.multi_reduction <maximumf>, %17, %cst_15 [1] : vector<8x16xf32> to vector<8xf32>
    %19 = vector.shape_cast %18 : vector<8xf32> to vector<8x1xf32>
    %20 = vector.broadcast %19 : vector<8x1xf32> to vector<8x16xf32>
    %21 = arith.subf %17, %20 : vector<8x16xf32>
    %22 = math.exp %21 : vector<8x16xf32>
    %cst_16 = arith.constant dense<0.000000e+00> : vector<8xf32>
    %23 = vector.multi_reduction <add>, %22, %cst_16 [1] : vector<8x16xf32> to vector<8xf32>
    %24 = vector.shape_cast %23 : vector<8xf32> to vector<8x1xf32>
    %25 = tpu.reciprocal %24 : vector<8x1xf32> -> vector<8x1xf32>
    %26 = vector.broadcast %25 : vector<8x1xf32> to vector<8x16xf32>
    %27 = arith.mulf %22, %26 : vector<8x16xf32>
    %c0_17 = arith.constant 0 : index
    %c0_18 = arith.constant 0 : index
    %c0_19 = arith.constant 0 : index
    %c0_20 = arith.constant 0 : index
    %28 = vector.load %arg14[%c0_17, %c0_18, %c0_19, %c0_20] : memref<4x1x8x16xf32, #tpu.memory_space<vmem>>, vector<1x1x8x16xf32>
    %29 = vector.shape_cast %28 : vector<1x1x8x16xf32> to vector<8x16xf32>
    %30 = vector.shape_cast %27 : vector<8x16xf32> to vector<1x1x8x16xf32>
    tpu.vector_store %arg14[%c0_17, %c0_18, %c0_19, %c0_20], %30 {strides = array<i32>} : memref<4x1x8x16xf32, #tpu.memory_space<vmem>>, vector<1x1x8x16xf32>,
    %c0_21 = arith.constant 0 : index
    %c0_22 = arith.constant 0 : index
    %c0_23 = arith.constant 0 : index
    %31 = vector.load %arg16[%c0_21, %c0_22, %c0_23] : memref<4x16x8xf32, #tpu.memory_space<vmem>>, vector<1x16x8xf32>
    %32 = vector.shape_cast %31 : vector<1x16x8xf32> to vector<16x8xf32>
    %cst_24 = arith.constant dense<0.000000e+00> : vector<8x8xf32>
    %33 = tpu.matmul %27, %32, %cst_24 {dimension_numbers = #tpu.dot_dimension_numbers<[1], [0], [0], [1], [0, 0, 1, 1], [], []>} : vector<8x16xf32>, vector<16x8xf32>, vector<8x8xf32> -> vector<8x8xf32>
    %c0_25 = arith.constant 0 : index
    %c0_26 = arith.constant 0 : index
    %c0_27 = arith.constant 0 : index
    %34 = vector.load %arg9[%c0_25, %c0_26, %c0_27] : memref<4x8x32xf32, #tpu.memory_space<vmem>>, vector<1x8x32xf32>
    %35 = vector.shape_cast %34 : vector<1x8x32xf32> to vector<8x32xf32>
    %cst_28 = arith.constant dense<0.000000e+00> : vector<8x32xf32>
    %36 = tpu.matmul %33, %35, %cst_28 {dimension_numbers = #tpu.dot_dimension_numbers<[1], [0], [0], [1], [0, 0, 1, 1], [], []>} : vector<8x8xf32>, vector<8x32xf32>, vector<8x32xf32> -> vector<8x32xf32>
    %37 = arith.addf %10, %36 : vector<8x32xf32>
    %c1 = arith.constant 1 : index
    %c0_29 = arith.constant 0 : index
    %c0_30 = arith.constant 0 : index
    %38 = vector.load %arg6[%c1, %c0_29, %c0_30] : memref<4x32x8xf32, #tpu.memory_space<vmem>>, vector<1x32x8xf32>
    %39 = vector.shape_cast %38 : vector<1x32x8xf32> to vector<32x8xf32>
    %cst_31 = arith.constant dense<0.000000e+00> : vector<8x8xf32>
    %40 = tpu.matmul %4, %39, %cst_31 {dimension_numbers = #tpu.dot_dimension_numbers<[1], [0], [0], [1], [0, 0, 1, 1], [], []>} : vector<8x32xf32>, vector<32x8xf32>, vector<8x8xf32> -> vector<8x8xf32>
    %c1_32 = arith.constant 1 : index
    %c0_33 = arith.constant 0 : index
    %c0_34 = arith.constant 0 : index
    %41 = vector.load %arg15[%c1_32, %c0_33, %c0_34] : memref<4x16x8xf32, #tpu.memory_space<vmem>>, vector<1x16x8xf32>
    %42 = vector.shape_cast %41 : vector<1x16x8xf32> to vector<16x8xf32>
    %cst_35 = arith.constant dense<0.000000e+00> : vector<8x16xf32>
    %43 = tpu.matmul %40, %42, %cst_35 {dimension_numbers = #tpu.dot_dimension_numbers<[1], [1], [0], [0], [0, 0, 1, 0], [], []>} : vector<8x8xf32>, vector<16x8xf32>, vector<8x16xf32> -> vector<8x16xf32>
    %44 = arith.addf %43, %9 : vector<8x16xf32>
    %cst_36 = arith.constant dense<0xFF800000> : vector<8xf32>
    %45 = vector.multi_reduction <maximumf>, %44, %cst_36 [1] : vector<8x16xf32> to vector<8xf32>
    %46 = vector.shape_cast %45 : vector<8xf32> to vector<8x1xf32>
    %47 = vector.broadcast %46 : vector<8x1xf32> to vector<8x16xf32>
    %48 = arith.subf %44, %47 : vector<8x16xf32>
    %49 = math.exp %48 : vector<8x16xf32>
    %cst_37 = arith.constant dense<0.000000e+00> : vector<8xf32>
    %50 = vector.multi_reduction <add>, %49, %cst_37 [1] : vector<8x16xf32> to vector<8xf32>
    %51 = vector.shape_cast %50 : vector<8xf32> to vector<8x1xf32>
    %52 = tpu.reciprocal %51 : vector<8x1xf32> -> vector<8x1xf32>
    %53 = vector.broadcast %52 : vector<8x1xf32> to vector<8x16xf32>
    %54 = arith.mulf %49, %53 : vector<8x16xf32>
    %c1_38 = arith.constant 1 : index
    %c0_39 = arith.constant 0 : index
    %c0_40 = arith.constant 0 : index
    %c0_41 = arith.constant 0 : index
    %55 = vector.load %arg14[%c1_38, %c0_39, %c0_40, %c0_41] : memref<4x1x8x16xf32, #tpu.memory_space<vmem>>, vector<1x1x8x16xf32>
    %56 = vector.shape_cast %55 : vector<1x1x8x16xf32> to vector<8x16xf32>
    %57 = vector.shape_cast %54 : vector<8x16xf32> to vector<1x1x8x16xf32>
    tpu.vector_store %arg14[%c1_38, %c0_39, %c0_40, %c0_41], %57 {strides = array<i32>} : memref<4x1x8x16xf32, #tpu.memory_space<vmem>>, vector<1x1x8x16xf32>,
    %c1_42 = arith.constant 1 : index
    %c0_43 = arith.constant 0 : index
    %c0_44 = arith.constant 0 : index
    %58 = vector.load %arg16[%c1_42, %c0_43, %c0_44] : memref<4x16x8xf32, #tpu.memory_space<vmem>>, vector<1x16x8xf32>
    %59 = vector.shape_cast %58 : vector<1x16x8xf32> to vector<16x8xf32>
    %cst_45 = arith.constant dense<0.000000e+00> : vector<8x8xf32>
    %60 = tpu.matmul %54, %59, %cst_45 {dimension_numbers = #tpu.dot_dimension_numbers<[1], [0], [0], [1], [0, 0, 1, 1], [], []>} : vector<8x16xf32>, vector<16x8xf32>, vector<8x8xf32> -> vector<8x8xf32>
    %c1_46 = arith.constant 1 : index
    %c0_47 = arith.constant 0 : index
    %c0_48 = arith.constant 0 : index
    %61 = vector.load %arg9[%c1_46, %c0_47, %c0_48] : memref<4x8x32xf32, #tpu.memory_space<vmem>>, vector<1x8x32xf32>
    %62 = vector.shape_cast %61 : vector<1x8x32xf32> to vector<8x32xf32>
    %cst_49 = arith.constant dense<0.000000e+00> : vector<8x32xf32>
    %63 = tpu.matmul %60, %62, %cst_49 {dimension_numbers = #tpu.dot_dimension_numbers<[1], [0], [0], [1], [0, 0, 1, 1], [], []>} : vector<8x8xf32>, vector<8x32xf32>, vector<8x32xf32> -> vector<8x32xf32>
    %64 = arith.addf %37, %63 : vector<8x32xf32>
    %c2 = arith.constant 2 : index
    %c0_50 = arith.constant 0 : index
    %c0_51 = arith.constant 0 : index
    %65 = vector.load %arg6[%c2, %c0_50, %c0_51] : memref<4x32x8xf32, #tpu.memory_space<vmem>>, vector<1x32x8xf32>
    %66 = vector.shape_cast %65 : vector<1x32x8xf32> to vector<32x8xf32>
    %cst_52 = arith.constant dense<0.000000e+00> : vector<8x8xf32>
    %67 = tpu.matmul %4, %66, %cst_52 {dimension_numbers = #tpu.dot_dimension_numbers<[1], [0], [0], [1], [0, 0, 1, 1], [], []>} : vector<8x32xf32>, vector<32x8xf32>, vector<8x8xf32> -> vector<8x8xf32>
    %c2_53 = arith.constant 2 : index
    %c0_54 = arith.constant 0 : index
    %c0_55 = arith.constant 0 : index
    %68 = vector.load %arg15[%c2_53, %c0_54, %c0_55] : memref<4x16x8xf32, #tpu.memory_space<vmem>>, vector<1x16x8xf32>
    %69 = vector.shape_cast %68 : vector<1x16x8xf32> to vector<16x8xf32>
    %cst_56 = arith.constant dense<0.000000e+00> : vector<8x16xf32>
    %70 = tpu.matmul %67, %69, %cst_56 {dimension_numbers = #tpu.dot_dimension_numbers<[1], [1], [0], [0], [0, 0, 1, 0], [], []>} : vector<8x8xf32>, vector<16x8xf32>, vector<8x16xf32> -> vector<8x16xf32>
    %71 = arith.addf %70, %9 : vector<8x16xf32>
    %cst_57 = arith.constant dense<0xFF800000> : vector<8xf32>
    %72 = vector.multi_reduction <maximumf>, %71, %cst_57 [1] : vector<8x16xf32> to vector<8xf32>
    %73 = vector.shape_cast %72 : vector<8xf32> to vector<8x1xf32>
    %74 = vector.broadcast %73 : vector<8x1xf32> to vector<8x16xf32>
    %75 = arith.subf %71, %74 : vector<8x16xf32>
    %76 = math.exp %75 : vector<8x16xf32>
    %cst_58 = arith.constant dense<0.000000e+00> : vector<8xf32>
    %77 = vector.multi_reduction <add>, %76, %cst_58 [1] : vector<8x16xf32> to vector<8xf32>
    %78 = vector.shape_cast %77 : vector<8xf32> to vector<8x1xf32>
    %79 = tpu.reciprocal %78 : vector<8x1xf32> -> vector<8x1xf32>
    %80 = vector.broadcast %79 : vector<8x1xf32> to vector<8x16xf32>
    %81 = arith.mulf %76, %80 : vector<8x16xf32>
    %c2_59 = arith.constant 2 : index
    %c0_60 = arith.constant 0 : index
    %c0_61 = arith.constant 0 : index
    %c0_62 = arith.constant 0 : index
    %82 = vector.load %arg14[%c2_59, %c0_60, %c0_61, %c0_62] : memref<4x1x8x16xf32, #tpu.memory_space<vmem>>, vector<1x1x8x16xf32>
    %83 = vector.shape_cast %82 : vector<1x1x8x16xf32> to vector<8x16xf32>
    %84 = vector.shape_cast %81 : vector<8x16xf32> to vector<1x1x8x16xf32>
    tpu.vector_store %arg14[%c2_59, %c0_60, %c0_61, %c0_62], %84 {strides = array<i32>} : memref<4x1x8x16xf32, #tpu.memory_space<vmem>>, vector<1x1x8x16xf32>,
    %c2_63 = arith.constant 2 : index
    %c0_64 = arith.constant 0 : index
    %c0_65 = arith.constant 0 : index
    %85 = vector.load %arg16[%c2_63, %c0_64, %c0_65] : memref<4x16x8xf32, #tpu.memory_space<vmem>>, vector<1x16x8xf32>
    %86 = vector.shape_cast %85 : vector<1x16x8xf32> to vector<16x8xf32>
    %cst_66 = arith.constant dense<0.000000e+00> : vector<8x8xf32>
    %87 = tpu.matmul %81, %86, %cst_66 {dimension_numbers = #tpu.dot_dimension_numbers<[1], [0], [0], [1], [0, 0, 1, 1], [], []>} : vector<8x16xf32>, vector<16x8xf32>, vector<8x8xf32> -> vector<8x8xf32>
    %c2_67 = arith.constant 2 : index
    %c0_68 = arith.constant 0 : index
    %c0_69 = arith.constant 0 : index
    %88 = vector.load %arg9[%c2_67, %c0_68, %c0_69] : memref<4x8x32xf32, #tpu.memory_space<vmem>>, vector<1x8x32xf32>
    %89 = vector.shape_cast %88 : vector<1x8x32xf32> to vector<8x32xf32>
    %cst_70 = arith.constant dense<0.000000e+00> : vector<8x32xf32>
    %90 = tpu.matmul %87, %89, %cst_70 {dimension_numbers = #tpu.dot_dimension_numbers<[1], [0], [0], [1], [0, 0, 1, 1], [], []>} : vector<8x8xf32>, vector<8x32xf32>, vector<8x32xf32> -> vector<8x32xf32>
    %91 = arith.addf %64, %90 : vector<8x32xf32>
    %c3 = arith.constant 3 : index
    %c0_71 = arith.constant 0 : index
    %c0_72 = arith.constant 0 : index
    %92 = vector.load %arg6[%c3, %c0_71, %c0_72] : memref<4x32x8xf32, #tpu.memory_space<vmem>>, vector<1x32x8xf32>
    %93 = vector.shape_cast %92 : vector<1x32x8xf32> to vector<32x8xf32>
    %cst_73 = arith.constant dense<0.000000e+00> : vector<8x8xf32>
    %94 = tpu.matmul %4, %93, %cst_73 {dimension_numbers = #tpu.dot_dimension_numbers<[1], [0], [0], [1], [0, 0, 1, 1], [], []>} : vector<8x32xf32>, vector<32x8xf32>, vector<8x8xf32> -> vector<8x8xf32>
    %c3_74 = arith.constant 3 : index
    %c0_75 = arith.constant 0 : index
    %c0_76 = arith.constant 0 : index
    %95 = vector.load %arg15[%c3_74, %c0_75, %c0_76] : memref<4x16x8xf32, #tpu.memory_space<vmem>>, vector<1x16x8xf32>
    %96 = vector.shape_cast %95 : vector<1x16x8xf32> to vector<16x8xf32>
    %cst_77 = arith.constant dense<0.000000e+00> : vector<8x16xf32>
    %97 = tpu.matmul %94, %96, %cst_77 {dimension_numbers = #tpu.dot_dimension_numbers<[1], [1], [0], [0], [0, 0, 1, 0], [], []>} : vector<8x8xf32>, vector<16x8xf32>, vector<8x16xf32> -> vector<8x16xf32>
    %98 = arith.addf %97, %9 : vector<8x16xf32>
    %cst_78 = arith.constant dense<0xFF800000> : vector<8xf32>
    %99 = vector.multi_reduction <maximumf>, %98, %cst_78 [1] : vector<8x16xf32> to vector<8xf32>
    %100 = vector.shape_cast %99 : vector<8xf32> to vector<8x1xf32>
    %101 = vector.broadcast %100 : vector<8x1xf32> to vector<8x16xf32>
    %102 = arith.subf %98, %101 : vector<8x16xf32>
    %103 = math.exp %102 : vector<8x16xf32>
    %cst_79 = arith.constant dense<0.000000e+00> : vector<8xf32>
    %104 = vector.multi_reduction <add>, %103, %cst_79 [1] : vector<8x16xf32> to vector<8xf32>
    %105 = vector.shape_cast %104 : vector<8xf32> to vector<8x1xf32>
    %106 = tpu.reciprocal %105 : vector<8x1xf32> -> vector<8x1xf32>
    %107 = vector.broadcast %106 : vector<8x1xf32> to vector<8x16xf32>
    %108 = arith.mulf %103, %107 : vector<8x16xf32>
    %c3_80 = arith.constant 3 : index
    %c0_81 = arith.constant 0 : index
    %c0_82 = arith.constant 0 : index
    %c0_83 = arith.constant 0 : index
    %109 = vector.load %arg14[%c3_80, %c0_81, %c0_82, %c0_83] : memref<4x1x8x16xf32, #tpu.memory_space<vmem>>, vector<1x1x8x16xf32>
    %110 = vector.shape_cast %109 : vector<1x1x8x16xf32> to vector<8x16xf32>
    %111 = vector.shape_cast %108 : vector<8x16xf32> to vector<1x1x8x16xf32>
    tpu.vector_store %arg14[%c3_80, %c0_81, %c0_82, %c0_83], %111 {strides = array<i32>} : memref<4x1x8x16xf32, #tpu.memory_space<vmem>>, vector<1x1x8x16xf32>,
    %c3_84 = arith.constant 3 : index
    %c0_85 = arith.constant 0 : index
    %c0_86 = arith.constant 0 : index
    %112 = vector.load %arg16[%c3_84, %c0_85, %c0_86] : memref<4x16x8xf32, #tpu.memory_space<vmem>>, vector<1x16x8xf32>
    %113 = vector.shape_cast %112 : vector<1x16x8xf32> to vector<16x8xf32>
    %cst_87 = arith.constant dense<0.000000e+00> : vector<8x8xf32>
    %114 = tpu.matmul %108, %113, %cst_87 {dimension_numbers = #tpu.dot_dimension_numbers<[1], [0], [0], [1], [0, 0, 1, 1], [], []>} : vector<8x16xf32>, vector<16x8xf32>, vector<8x8xf32> -> vector<8x8xf32>
    %c3_88 = arith.constant 3 : index
    %c0_89 = arith.constant 0 : index
    %c0_90 = arith.constant 0 : index
    %115 = vector.load %arg9[%c3_88, %c0_89, %c0_90] : memref<4x8x32xf32, #tpu.memory_space<vmem>>, vector<1x8x32xf32>
    %116 = vector.shape_cast %115 : vector<1x8x32xf32> to vector<8x32xf32>
    %cst_91 = arith.constant dense<0.000000e+00> : vector<8x32xf32>
    %117 = tpu.matmul %114, %116, %cst_91 {dimension_numbers = #tpu.dot_dimension_numbers<[1], [0], [0], [1], [0, 0, 1, 1], [], []>} : vector<8x8xf32>, vector<8x32xf32>, vector<8x32xf32> -> vector<8x32xf32>
    %118 = arith.addf %91, %117 : vector<8x32xf32>
    %c0_92 = arith.constant 0 : index
    %c0_93 = arith.constant 0 : index
    %119 = vector.load %arg10[%c0_92, %c0_93] : memref<1x32xf32, #tpu.memory_space<vmem>>, vector<1x32xf32>
    %120 = vector.broadcast %119 : vector<1x32xf32> to vector<8x32xf32>
    %121 = arith.addf %118, %120 : vector<8x32xf32>
    %122 = arith.addf %121, %4 : vector<8x32xf32>
    %cst_94 = arith.constant dense<0.000000e+00> : vector<8xf32>
    %123 = vector.multi_reduction <add>, %122, %cst_94 [1] : vector<8x32xf32> to vector<8xf32>
    %124 = vector.shape_cast %123 : vector<8xf32> to vector<8x1xf32>
    %cst_95 = arith.constant 3.200000e+01 : f32
    %125 = vector.broadcast %cst_95 : f32 to vector<8x1xf32>
    %126 = arith.divf %124, %125 : vector<8x1xf32>
    %127 = vector.broadcast %126 : vector<8x1xf32> to vector<8x32xf32>
    %128 = arith.subf %122, %127 : vector<8x32xf32>
    %129 = arith.mulf %128, %128 : vector<8x32xf32>
    %cst_96 = arith.constant dense<0.000000e+00> : vector<8xf32>
    %130 = vector.multi_reduction <add>, %129, %cst_96 [1] : vector<8x32xf32> to vector<8xf32>
    %131 = vector.shape_cast %130 : vector<8xf32> to vector<8x1xf32>
    %cst_97 = arith.constant 3.100000e+01 : f32
    %132 = vector.broadcast %cst_97 : f32 to vector<8x1xf32>
    %133 = arith.divf %131, %132 : vector<8x1xf32>
    %134 = math.sqrt %133 : vector<8x1xf32>
    %cst_98 = arith.constant 1.000000e-03 : f32
    %135 = vector.broadcast %cst_98 : f32 to vector<8x1xf32>
    %136 = arith.addf %134, %135 : vector<8x1xf32>
    %137 = tpu.reciprocal %136 : vector<8x1xf32> -> vector<8x1xf32>
    %138 = vector.broadcast %126 : vector<8x1xf32> to vector<8x32xf32>
    %139 = arith.subf %122, %138 : vector<8x32xf32>
    %140 = vector.broadcast %137 : vector<8x1xf32> to vector<8x32xf32>
    %141 = arith.mulf %139, %140 : vector<8x32xf32>
    %c0_99 = arith.constant 0 : index
    %c0_100 = arith.constant 0 : index
    %142 = vector.load %arg11[%c0_99, %c0_100] : memref<1x32xf32, #tpu.memory_space<vmem>>, vector<1x32xf32>
    %143 = vector.broadcast %142 : vector<1x32xf32> to vector<8x32xf32>
    %144 = arith.mulf %141, %143 : vector<8x32xf32>
    %c0_101 = arith.constant 0 : index
    %c0_102 = arith.constant 0 : index
    %145 = vector.load %arg12[%c0_101, %c0_102] : memref<1x32xf32, #tpu.memory_space<vmem>>, vector<1x32xf32>
    %146 = vector.broadcast %145 : vector<1x32xf32> to vector<8x32xf32>
    %147 = arith.addf %144, %146 : vector<8x32xf32>
    %c0_103 = arith.constant 0 : index
    %c0_104 = arith.constant 0 : index
    %c0_105 = arith.constant 0 : index
    %148 = vector.load %arg13[%c0_103, %c0_104, %c0_105] : memref<1x8x32xf32, #tpu.memory_space<vmem>>, vector<1x8x32xf32>
    %149 = vector.shape_cast %148 : vector<1x8x32xf32> to vector<8x32xf32>
    %150 = vector.shape_cast %147 : vector<8x32xf32> to vector<1x8x32xf32>
    tpu.vector_store %arg13[%c0_103, %c0_104, %c0_105], %150 {strides = array<i32>} : memref<1x8x32xf32, #tpu.memory_space<vmem>>, vector<1x8x32xf32>,
    return
  }
  func.func @transform_0(%arg0: i32, %arg1: i32) -> (i32, i32, i32) {
    %c0_i32 = arith.constant 0 : i32
    %c0_i32_0 = arith.constant 0 : i32
    return %arg0, %arg1, %c0_i32 : i32, i32, i32
  }
  func.func @transform_1(%arg0: i32, %arg1: i32) -> (i32, i32, i32) {
    %c0_i32 = arith.constant 0 : i32
    %c0_i32_0 = arith.constant 0 : i32
    %c0_i32_1 = arith.constant 0 : i32
    return %arg0, %c0_i32, %c0_i32_0 : i32, i32, i32
  }
  func.func @transform_2(%arg0: i32, %arg1: i32) -> (i32, i32, i32) {
    %c0_i32 = arith.constant 0 : i32
    %c0_i32_0 = arith.constant 0 : i32
    %c0_i32_1 = arith.constant 0 : i32
    return %arg0, %c0_i32, %c0_i32_0 : i32, i32, i32
  }
  func.func @transform_3(%arg0: i32, %arg1: i32) -> (i32, i32, i32) {
    %c0_i32 = arith.constant 0 : i32
    %c0_i32_0 = arith.constant 0 : i32
    return %arg0, %arg1, %c0_i32 : i32, i32, i32
  }
  func.func @transform_4(%arg0: i32, %arg1: i32) -> (i32, i32, i32) {
    %c0_i32 = arith.constant 0 : i32
    %c0_i32_0 = arith.constant 0 : i32
    %c0_i32_1 = arith.constant 0 : i32
    %c0_i32_2 = arith.constant 0 : i32
    return %c0_i32, %c0_i32_0, %c0_i32_1 : i32, i32, i32
  }
  func.func @transform_5(%arg0: i32, %arg1: i32) -> (i32, i32, i32) {
    %c0_i32 = arith.constant 0 : i32
    %c0_i32_0 = arith.constant 0 : i32
    %c0_i32_1 = arith.constant 0 : i32
    %c0_i32_2 = arith.constant 0 : i32
    return %c0_i32, %c0_i32_0, %c0_i32_1 : i32, i32, i32
  }
  func.func @transform_6(%arg0: i32, %arg1: i32) -> (i32, i32, i32) {
    %c0_i32 = arith.constant 0 : i32
    %c0_i32_0 = arith.constant 0 : i32
    %c0_i32_1 = arith.constant 0 : i32
    %c0_i32_2 = arith.constant 0 : i32
    return %c0_i32, %c0_i32_0, %c0_i32_1 : i32, i32, i32
  }
  func.func @transform_7(%arg0: i32, %arg1: i32) -> (i32, i32, i32) {
    %c0_i32 = arith.constant 0 : i32
    %c0_i32_0 = arith.constant 0 : i32
    %c0_i32_1 = arith.constant 0 : i32
    %c0_i32_2 = arith.constant 0 : i32
    return %c0_i32, %c0_i32_0, %c0_i32_1 : i32, i32, i32
  }
  func.func @transform_8(%arg0: i32, %arg1: i32) -> (i32, i32) {
    %c0_i32 = arith.constant 0 : i32
    %c0_i32_0 = arith.constant 0 : i32
    %c0_i32_1 = arith.constant 0 : i32
    return %c0_i32, %c0_i32_0 : i32, i32
  }
  func.func @transform_9(%arg0: i32, %arg1: i32) -> (i32, i32) {
    %c0_i32 = arith.constant 0 : i32
    %c0_i32_0 = arith.constant 0 : i32
    %c0_i32_1 = arith.constant 0 : i32
    return %c0_i32, %c0_i32_0 : i32, i32
  }
  func.func @transform_10(%arg0: i32, %arg1: i32) -> (i32, i32) {
    %c0_i32 = arith.constant 0 : i32
    %c0_i32_0 = arith.constant 0 : i32
    %c0_i32_1 = arith.constant 0 : i32
    return %c0_i32, %c0_i32_0 : i32, i32
  }
  func.func @transform_11(%arg0: i32, %arg1: i32) -> (i32, i32, i32) {
    %c0_i32 = arith.constant 0 : i32
    %c0_i32_0 = arith.constant 0 : i32
    return %arg0, %arg1, %c0_i32 : i32, i32, i32
  }
  func.func @transform_12(%arg0: i32, %arg1: i32) -> (i32, i32, i32, i32) {
    %c0_i32 = arith.constant 0 : i32
    %c0_i32_0 = arith.constant 0 : i32
    %c0_i32_1 = arith.constant 0 : i32
    return %c0_i32, %arg0, %arg1, %c0_i32_0 : i32, i32, i32, i32
  }
}

</mosaic_0001>

<llo_original>
// kernel: tpu_custom_call.1
$region0: #{tpu_custom_call.1}
  #allocation0 [shape = 'u32[]', space=smem, size = 0x4, offset = 0x4, fixed_abs, tag = 'smem constant byte address 0x4 - core index']
  #allocation1 [shape = 'u32[72,128]{1,0:T(1,128)}', space=vmem, size = 0x9000, scoped, tag = 'internal scratch']
  #allocation2 [shape = 'f32[4,16,8]{2,1,0:T(8,128)}', space=vmem, size = 0x8000, scoped, tag = 'scratch operand']
  #allocation3 [shape = 'f32[4,16,8]{2,1,0:T(8,128)}', space=vmem, size = 0x8000, scoped, tag = 'scratch operand']
  %s0 = inlined_call_operand.vmem [shape: f32[2,16,32], index: 0, kind: input, shape index: {}]
  %s1 = inlined_call_operand.vmem [shape: f32[2,16,32], index: 1, kind: input, shape index: {}]
  %s2 = inlined_call_operand.vmem [shape: f32[2,16,32], index: 2, kind: input, shape index: {}]
  %s3 = inlined_call_operand.vmem [shape: bf16[2,16,16], index: 3, kind: input, shape index: {}]
  %s4 = inlined_call_operand.vmem [shape: f32[4,32,8], index: 4, kind: input, shape index: {}]
  %s5 = inlined_call_operand.vmem [shape: f32[4,32,8], index: 5, kind: input, shape index: {}]
  %s6 = inlined_call_operand.vmem [shape: f32[4,32,8], index: 6, kind: input, shape index: {}]
  %s7 = inlined_call_operand.vmem [shape: f32[4,8,32], index: 7, kind: input, shape index: {}]
  %s8 = inlined_call_operand.vmem [shape: f32[1,32], index: 8, kind: input, shape index: {}]
  %s9 = inlined_call_operand.vmem [shape: f32[1,32], index: 9, kind: input, shape index: {}]
  %s10 = inlined_call_operand.vmem [shape: f32[1,32], index: 10, kind: input, shape index: {}]
  %s11 = inlined_call_operand.hbm [shape: f32[2,16,32], index: 11, kind: output, shape index: {0}]
  %s12 = inlined_call_operand.hbm [shape: f32[4,2,16,16], index: 12, kind: output, shape index: {1}]
  %13 = xla_tuple %s11, %s12
  %s14 = sld [smem:[#allocation0]]
  $region89: #{tpu_custom_call.1} parent=0
    _
  %s16 = ssub.s32 1, %s14
  %s17 = scalar_select 0, %s16, %s14
  $region1: #{tpu_custom_call.1} parent=0
    #allocation4 [shape = 'u8[8192]{0}', space=vmem, size = 0x2000, scoped, tag = 'output window, operand 0']
    #allocation5 [shape = 's32[2]{0}', space=sflag, size = 0x8, scoped, tag = 'scoped memory for tpu_custom_call.1']
    #allocation6 [shape = 'u8[32768]{0}', space=vmem, size = 0x8000, scoped, tag = 'output window, operand 1']
    #allocation7 [shape = 's32[2]{0}', space=sflag, size = 0x8, scoped, tag = 'scoped memory for tpu_custom_call.1']
    %18 = vsyncpa [#allocation5], 0
    %s19 = scalar_lea.sflag [#allocation5], 1
    %20 = vsyncpa %s19, 0
    %21 = vsyncpa [#allocation7], 0
    %s22 = scalar_lea.sflag [#allocation7], 1
    %23 = vsyncpa %s22, 0
    loop: start=0, step=1, limit=6
    $region2: #{tpu_custom_call.1} parent=1 // loop_pre_header
      _
    $region3: #{tpu_custom_call.1} parent=1 // loop_header
      %s25 = sphi 0, %s29
      %p26 = scmp.ge.s32.totalorder %s25, 6
      %s32 = sphi 0, %s44
      %s33 = sphi 0, %s40
      %s34 = sphi 0, %s32
      %s35 = sphi 0, %s33
      %s36 = sphi 0, %s34
      %s37 = sphi 0, %s35
      %s49 = sphi 0, %s51
      %s52 = sphi 0, %s49
      %s53 = sphi 0, %s52
      %s69 = sphi 0, %s53
      %s75 = sphi 0, %s77
      %s78 = sphi 0, %s75
      %s79 = sphi 0, %s78
      %s95 = sphi 0, %s79
      %s101 = sphi 0, %s103
      %s104 = sphi 0, %s101
      %s105 = sphi 0, %s104
      %s121 = sphi 0, %s105
      %s129 = sphi 0, %s131
      %s132 = sphi 0, %s129
      %s133 = sphi 0, %s132
      %s149 = sphi 0, %s133
      %s153 = sphi 0, %s153
      %s155 = sphi 0, %s153
      %s156 = sphi 0, %s155
      %s170 = sphi 0, %s156
      %s174 = sphi 0, %s174
      %s176 = sphi 0, %s174
      %s177 = sphi 0, %s176
      %s191 = sphi 0, %s177
      %s195 = sphi 0, %s195
      %s197 = sphi 0, %s195
      %s198 = sphi 0, %s197
      %s212 = sphi 0, %s198
      %s216 = sphi 0, %s216
      %s218 = sphi 0, %s216
      %s219 = sphi 0, %s218
      %s233 = sphi 0, %s219
      %s237 = sphi 0, %s237
      %s239 = sphi 0, %s237
      %s240 = sphi 0, %s239
      %s254 = sphi 0, %s240
      %s258 = sphi 0, %s258
      %s260 = sphi 0, %s258
      %s261 = sphi 0, %s260
      %s275 = sphi 0, %s261
      %s279 = sphi 0, %s279
      %s281 = sphi 0, %s279
      %s282 = sphi 0, %s281
      %s296 = sphi 0, %s282
      %s304 = sphi 0, %s306
      %s307 = sphi 0, %s304
      %s308 = sphi 0, %s307
      %s324 = sphi 0, %s308
      %s332 = sphi 0, %s334
      %s335 = sphi 0, %s332
      %s336 = sphi 0, %s335
      %s352 = sphi 0, %s336
    $region4: #{tpu_custom_call.1} parent=1 // loop_header_branch
      %28 = sbr.rel (%p26) target = $region8
    $region5: #{tpu_custom_call.1} parent=1 // loop_body
      %s30 = ssub.s32 %s25, 1
      %s31 = ssub.s32 %s25, 2
      %s38 = sadd.s32 1, %s33
      %p39 = scmp.ge.s32.totalorder %s38, 2
      %s40 = scalar_select %p39, 0, %s38
      %s41 = sadd.s32 1, %s32
      %s42 = scalar_select %p39, %s41, %s32
      %p43 = scmp.ge.s32.totalorder %s42, 2
      %s44 = scalar_select %p43, 0, %s42
      %s45 = ssub.s32 %s32, %s44
      %s46 = ssub.s32 %s33, %s40
      %s47 = sor.u32 %s45, %s46
      %p48 = scmp.eq.s32.totalorder %s47, 0
      %s50 = sadd.s32 %s49, 1
      %s51 = scalar_select %p48, %s49, %s50
      %p54 = pneg %p48
      %p55 = scmp.eq.s32.totalorder %s25, 3
      %p56 = por %p54, %p55
      %p57 = scmp.ne.s32.totalorder %s49, %s52
      %p58 = scmp.eq.s32.totalorder %s25, 0
      %p59 = por %p57, %p58
      %p60 = scmp.ne.s32.totalorder %s49, %s52
      %p61 = scmp.eq.s32.totalorder %s30, 3
      %p62 = por %p60, %p61
      %p63 = scmp.ne.s32.totalorder %s52, %s53
      %p64 = scmp.eq.s32.totalorder %s30, 0
      %p65 = por %p63, %p64
      %p66 = scmp.ne.s32.totalorder %s52, %s53
      %p67 = scmp.eq.s32.totalorder %s31, 3
      %p68 = por %p66, %p67
      %p70 = scmp.ne.s32.totalorder %s53, %s69
      %p71 = scmp.eq.s32.totalorder %s31, 0
      %p72 = por %p70, %p71
      %s73 = ssub.s32 %s32, %s44
      %p74 = scmp.eq.s32.totalorder %s73, 0
      %s76 = sadd.s32 %s75, 1
      %s77 = scalar_select %p74, %s75, %s76
      %p80 = pneg %p74
      %p81 = scmp.eq.s32.totalorder %s25, 3
      %p82 = por %p80, %p81
      %p83 = scmp.ne.s32.totalorder %s75, %s78
      %p84 = scmp.eq.s32.totalorder %s25, 0
      %p85 = por %p83, %p84
      %p86 = scmp.ne.s32.totalorder %s75, %s78
      %p87 = scmp.eq.s32.totalorder %s30, 3
      %p88 = por %p86, %p87
      %p89 = scmp.ne.s32.totalorder %s78, %s79
      %p90 = scmp.eq.s32.totalorder %s30, 0
      %p91 = por %p89, %p90
      %p92 = scmp.ne.s32.totalorder %s78, %s79
      %p93 = scmp.eq.s32.totalorder %s31, 3
      %p94 = por %p92, %p93
      %p96 = scmp.ne.s32.totalorder %s79, %s95
      %p97 = scmp.eq.s32.totalorder %s31, 0
      %p98 = por %p96, %p97
      %s99 = ssub.s32 %s32, %s44
      %p100 = scmp.eq.s32.totalorder %s99, 0
      %s102 = sadd.s32 %s101, 1
      %s103 = scalar_select %p100, %s101, %s102
      %p106 = pneg %p100
      %p107 = scmp.eq.s32.totalorder %s25, 3
      %p108 = por %p106, %p107
      %p109 = scmp.ne.s32.totalorder %s101, %s104
      %p110 = scmp.eq.s32.totalorder %s25, 0
      %p111 = por %p109, %p110
      %p112 = scmp.ne.s32.totalorder %s101, %s104
      %p113 = scmp.eq.s32.totalorder %s30, 3
      %p114 = por %p112, %p113
      %p115 = scmp.ne.s32.totalorder %s104, %s105
      %p116 = scmp.eq.s32.totalorder %s30, 0
      %p117 = por %p115, %p116
      %p118 = scmp.ne.s32.totalorder %s104, %s105
      %p119 = scmp.eq.s32.totalorder %s31, 3
      %p120 = por %p118, %p119
      %p122 = scmp.ne.s32.totalorder %s105, %s121
      %p123 = scmp.eq.s32.totalorder %s31, 0
      %p124 = por %p122, %p123
      %s125 = ssub.s32 %s32, %s44
      %s126 = ssub.s32 %s33, %s40
      %s127 = sor.u32 %s125, %s126
      %p128 = scmp.eq.s32.totalorder %s127, 0
      %s130 = sadd.s32 %s129, 1
      %s131 = scalar_select %p128, %s129, %s130
      %p134 = pneg %p128
      %p135 = scmp.eq.s32.totalorder %s25, 3
      %p136 = por %p134, %p135
      %p137 = scmp.ne.s32.totalorder %s129, %s132
      %p138 = scmp.eq.s32.totalorder %s25, 0
      %p139 = por %p137, %p138
      %p140 = scmp.ne.s32.totalorder %s129, %s132
      %p141 = scmp.eq.s32.totalorder %s30, 3
      %p142 = por %p140, %p141
      %p143 = scmp.ne.s32.totalorder %s132, %s133
      %p144 = scmp.eq.s32.totalorder %s30, 0
      %p145 = por %p143, %p144
      %p146 = scmp.ne.s32.totalorder %s132, %s133
      %p147 = scmp.eq.s32.totalorder %s31, 3
      %p148 = por %p146, %p147
      %p150 = scmp.ne.s32.totalorder %s133, %s149
      %p151 = scmp.eq.s32.totalorder %s31, 0
      %p152 = por %p150, %p151
      %s154 = sadd.s32 %s153, 1
      %p157 = scmp.eq.s32.totalorder %s25, 3
      %p158 = scmp.ne.s32.totalorder %s153, %s155
      %p159 = scmp.eq.s32.totalorder %s25, 0
      %p160 = por %p158, %p159
      %p161 = scmp.ne.s32.totalorder %s153, %s155
      %p162 = scmp.eq.s32.totalorder %s30, 3
      %p163 = por %p161, %p162
      %p164 = scmp.ne.s32.totalorder %s155, %s156
      %p165 = scmp.eq.s32.totalorder %s30, 0
      %p166 = por %p164, %p165
      %p167 = scmp.ne.s32.totalorder %s155, %s156
      %p168 = scmp.eq.s32.totalorder %s31, 3
      %p169 = por %p167, %p168
      %p171 = scmp.ne.s32.totalorder %s156, %s170
      %p172 = scmp.eq.s32.totalorder %s31, 0
      %p173 = por %p171, %p172
      %s175 = sadd.s32 %s174, 1
      %p178 = scmp.eq.s32.totalorder %s25, 3
      %p179 = scmp.ne.s32.totalorder %s174, %s176
      %p180 = scmp.eq.s32.totalorder %s25, 0
      %p181 = por %p179, %p180
      %p182 = scmp.ne.s32.totalorder %s174, %s176
      %p183 = scmp.eq.s32.totalorder %s30, 3
      %p184 = por %p182, %p183
      %p185 = scmp.ne.s32.totalorder %s176, %s177
      %p186 = scmp.eq.s32.totalorder %s30, 0
      %p187 = por %p185, %p186
      %p188 = scmp.ne.s32.totalorder %s176, %s177
      %p189 = scmp.eq.s32.totalorder %s31, 3
      %p190 = por %p188, %p189
      %p192 = scmp.ne.s32.totalorder %s177, %s191
      %p193 = scmp.eq.s32.totalorder %s31, 0
      %p194 = por %p192, %p193
      %s196 = sadd.s32 %s195, 1
      %p199 = scmp.eq.s32.totalorder %s25, 3
      %p200 = scmp.ne.s32.totalorder %s195, %s197
      %p201 = scmp.eq.s32.totalorder %s25, 0
      %p202 = por %p200, %p201
      %p203 = scmp.ne.s32.totalorder %s195, %s197
      %p204 = scmp.eq.s32.totalorder %s30, 3
      %p205 = por %p203, %p204
      %p206 = scmp.ne.s32.totalorder %s197, %s198
      %p207 = scmp.eq.s32.totalorder %s30, 0
      %p208 = por %p206, %p207
      %p209 = scmp.ne.s32.totalorder %s197, %s198
      %p210 = scmp.eq.s32.totalorder %s31, 3
      %p211 = por %p209, %p210
      %p213 = scmp.ne.s32.totalorder %s198, %s212
      %p214 = scmp.eq.s32.totalorder %s31, 0
      %p215 = por %p213, %p214
      %s217 = sadd.s32 %s216, 1
      %p220 = scmp.eq.s32.totalorder %s25, 3
      %p221 = scmp.ne.s32.totalorder %s216, %s218
      %p222 = scmp.eq.s32.totalorder %s25, 0
      %p223 = por %p221, %p222
      %p224 = scmp.ne.s32.totalorder %s216, %s218
      %p225 = scmp.eq.s32.totalorder %s30, 3
      %p226 = por %p224, %p225
      %p227 = scmp.ne.s32.totalorder %s218, %s219
      %p228 = scmp.eq.s32.totalorder %s30, 0
      %p229 = por %p227, %p228
      %p230 = scmp.ne.s32.totalorder %s218, %s219
      %p231 = scmp.eq.s32.totalorder %s31, 3
      %p232 = por %p230, %p231
      %p234 = scmp.ne.s32.totalorder %s219, %s233
      %p235 = scmp.eq.s32.totalorder %s31, 0
      %p236 = por %p234, %p235
      %s238 = sadd.s32 %s237, 1
      %p241 = scmp.eq.s32.totalorder %s25, 3
      %p242 = scmp.ne.s32.totalorder %s237, %s239
      %p243 = scmp.eq.s32.totalorder %s25, 0
      %p244 = por %p242, %p243
      %p245 = scmp.ne.s32.totalorder %s237, %s239
      %p246 = scmp.eq.s32.totalorder %s30, 3
      %p247 = por %p245, %p246
      %p248 = scmp.ne.s32.totalorder %s239, %s240
      %p249 = scmp.eq.s32.totalorder %s30, 0
      %p250 = por %p248, %p249
      %p251 = scmp.ne.s32.totalorder %s239, %s240
      %p252 = scmp.eq.s32.totalorder %s31, 3
      %p253 = por %p251, %p252
      %p255 = scmp.ne.s32.totalorder %s240, %s254
      %p256 = scmp.eq.s32.totalorder %s31, 0
      %p257 = por %p255, %p256
      %s259 = sadd.s32 %s258, 1
      %p262 = scmp.eq.s32.totalorder %s25, 3
      %p263 = scmp.ne.s32.totalorder %s258, %s260
      %p264 = scmp.eq.s32.totalorder %s25, 0
      %p265 = por %p263, %p264
      %p266 = scmp.ne.s32.totalorder %s258, %s260
      %p267 = scmp.eq.s32.totalorder %s30, 3
      %p268 = por %p266, %p267
      %p269 = scmp.ne.s32.totalorder %s260, %s261
      %p270 = scmp.eq.s32.totalorder %s30, 0
      %p271 = por %p269, %p270
      %p272 = scmp.ne.s32.totalorder %s260, %s261
      %p273 = scmp.eq.s32.totalorder %s31, 3
      %p274 = por %p272, %p273
      %p276 = scmp.ne.s32.totalorder %s261, %s275
      %p277 = scmp.eq.s32.totalorder %s31, 0
      %p278 = por %p276, %p277
      %s280 = sadd.s32 %s279, 1
      %p283 = scmp.eq.s32.totalorder %s25, 3
      %p284 = scmp.ne.s32.totalorder %s279, %s281
      %p285 = scmp.eq.s32.totalorder %s25, 0
      %p286 = por %p284, %p285
      %p287 = scmp.ne.s32.totalorder %s279, %s281
      %p288 = scmp.eq.s32.totalorder %s30, 3
      %p289 = por %p287, %p288
      %p290 = scmp.ne.s32.totalorder %s281, %s282
      %p291 = scmp.eq.s32.totalorder %s30, 0
      %p292 = por %p290, %p291
      %p293 = scmp.ne.s32.totalorder %s281, %s282
      %p294 = scmp.eq.s32.totalorder %s31, 3
      %p295 = por %p293, %p294
      %p297 = scmp.ne.s32.totalorder %s282, %s296
      %p298 = scmp.eq.s32.totalorder %s31, 0
      %p299 = por %p297, %p298
      %s300 = ssub.s32 %s32, %s44
      %s301 = ssub.s32 %s33, %s40
      %s302 = sor.u32 %s300, %s301
      %p303 = scmp.eq.s32.totalorder %s302, 0
      %s305 = sadd.s32 %s304, 1
      %s306 = scalar_select %p303, %s304, %s305
      %p309 = pneg %p303
      %p310 = scmp.eq.s32.totalorder %s25, 3
      %p311 = por %p309, %p310
      %p312 = scmp.ne.s32.totalorder %s304, %s307
      %p313 = scmp.eq.s32.totalorder %s25, 0
      %p314 = por %p312, %p313
      %p315 = scmp.ne.s32.totalorder %s304, %s307
      %p316 = scmp.eq.s32.totalorder %s30, 3
      %p317 = por %p315, %p316
      %p318 = scmp.ne.s32.totalorder %s307, %s308
      %p319 = scmp.eq.s32.totalorder %s30, 0
      %p320 = por %p318, %p319
      %p321 = scmp.ne.s32.totalorder %s307, %s308
      %p322 = scmp.eq.s32.totalorder %s31, 3
      %p323 = por %p321, %p322
      %p325 = scmp.ne.s32.totalorder %s308, %s324
      %p326 = scmp.eq.s32.totalorder %s31, 0
      %p327 = por %p325, %p326
      %s328 = ssub.s32 %s32, %s44
      %s329 = ssub.s32 %s33, %s40
      %s330 = sor.u32 %s328, %s329
      %p331 = scmp.eq.s32.totalorder %s330, 0
      %s333 = sadd.s32 %s332, 1
      %s334 = scalar_select %p331, %s332, %s333
      %p337 = pneg %p331
      %p338 = scmp.eq.s32.totalorder %s25, 3
      %p339 = por %p337, %p338
      %p340 = scmp.ne.s32.totalorder %s332, %s335
      %p341 = scmp.eq.s32.totalorder %s25, 0
      %p342 = por %p340, %p341
      %p343 = scmp.ne.s32.totalorder %s332, %s335
      %p344 = scmp.eq.s32.totalorder %s30, 3
      %p345 = por %p343, %p344
      %p346 = scmp.ne.s32.totalorder %s335, %s336
      %p347 = scmp.eq.s32.totalorder %s30, 0
      %p348 = por %p346, %p347
      %p349 = scmp.ne.s32.totalorder %s335, %s336
      %p350 = scmp.eq.s32.totalorder %s31, 3
      %p351 = por %p349, %p350
      %p353 = scmp.ne.s32.totalorder %s336, %s352
      %p354 = scmp.eq.s32.totalorder %s31, 0
      %p355 = por %p353, %p354
      %p356 = scmp.le.s32.totalorder 1, %s25
      %p357 = scmp.lt.s32.totalorder %s25, 5
      %p358 = pnand %p356, %p357
      %p359 = pneg %p358
      // Predicated region
      $region9: #{tpu_custom_call.1} parent=5 // pred_check
        _
      $region10: #{tpu_custom_call.1} parent=5 // pred_check_branch
        %361 = sbr.rel (%p358) target = $region12
      $region11: #{tpu_custom_call.1} parent=5 // pred_region
        %s362 = ssub.s32 %s25, 1
        // Predicated region
        $region13: #{tpu_custom_call.1} parent=11 // pred_check
          %p363 = pneg %p166
        $region14: #{tpu_custom_call.1} parent=11 // pred_check_branch
          %365 = sbr.rel (%p363) target = $region16
        $region15: #{tpu_custom_call.1} parent=11 // pred_region
          _
        $region16: #{tpu_custom_call.1} parent=11 // pred_fallthru
          _
        // Predicated region
        $region17: #{tpu_custom_call.1} parent=11 // pred_check
          %p366 = pneg %p187
        $region18: #{tpu_custom_call.1} parent=11 // pred_check_branch
          %368 = sbr.rel (%p366) target = $region20
        $region19: #{tpu_custom_call.1} parent=11 // pred_region
          _
        $region20: #{tpu_custom_call.1} parent=11 // pred_fallthru
          _
        // Predicated region
        $region21: #{tpu_custom_call.1} parent=11 // pred_check
          %p369 = pneg %p208
        $region22: #{tpu_custom_call.1} parent=11 // pred_check_branch
          %371 = sbr.rel (%p369) target = $region24
        $region23: #{tpu_custom_call.1} parent=11 // pred_region
          _
        $region24: #{tpu_custom_call.1} parent=11 // pred_fallthru
          _
        // Predicated region
        $region25: #{tpu_custom_call.1} parent=11 // pred_check
          %p372 = pneg %p229
        $region26: #{tpu_custom_call.1} parent=11 // pred_check_branch
          %374 = sbr.rel (%p372) target = $region28
        $region27: #{tpu_custom_call.1} parent=11 // pred_region
          _
        $region28: #{tpu_custom_call.1} parent=11 // pred_fallthru
          _
        // Predicated region
        $region29: #{tpu_custom_call.1} parent=11 // pred_check
          %p375 = pneg %p250
        $region30: #{tpu_custom_call.1} parent=11 // pred_check_branch
          %377 = sbr.rel (%p375) target = $region32
        $region31: #{tpu_custom_call.1} parent=11 // pred_region
          _
        $region32: #{tpu_custom_call.1} parent=11 // pred_fallthru
          _
        // Predicated region
        $region33: #{tpu_custom_call.1} parent=11 // pred_check
          %p378 = pneg %p271
        $region34: #{tpu_custom_call.1} parent=11 // pred_check_branch
          %380 = sbr.rel (%p378) target = $region36
        $region35: #{tpu_custom_call.1} parent=11 // pred_region
          _
        $region36: #{tpu_custom_call.1} parent=11 // pred_fallthru
          _
        // Predicated region
        $region37: #{tpu_custom_call.1} parent=11 // pred_check
          %p381 = pneg %p292
        $region38: #{tpu_custom_call.1} parent=11 // pred_check_branch
          %383 = sbr.rel (%p381) target = $region40
        $region39: #{tpu_custom_call.1} parent=11 // pred_region
          _
        $region40: #{tpu_custom_call.1} parent=11 // pred_fallthru
          _
      $region12: #{tpu_custom_call.1} parent=5 // pred_fallthru
        _
      %p384 = scmp.lt.s32.totalorder %s25, 4
      // Predicated region
      $region41: #{tpu_custom_call.1} parent=5 // pred_check
        %p385 = pneg %p384
      $region42: #{tpu_custom_call.1} parent=5 // pred_check_branch
        %387 = sbr.rel (%p385) target = $region44
      $region43: #{tpu_custom_call.1} parent=5 // pred_region
        // Predicated region
        $region45: #{tpu_custom_call.1} parent=43 // pred_check
          %p388 = pneg %p59
        $region46: #{tpu_custom_call.1} parent=43 // pred_check_branch
          %390 = sbr.rel (%p388) target = $region48
        $region47: #{tpu_custom_call.1} parent=43 // pred_region
          %p391 = scmp.lt.s32.totalorder %s32, 1
          %s392 = scalar_select %p391, %s32, 1
          %p393 = scmp.lt.s32.totalorder %s33, 1
          %s394 = scalar_select %p393, %s33, 1
          %s395 = smul.addr %s392, 2
          %s396 = sadd.s32 %s394, %s395
          %s397 = smul.addr %s396, 8
          %s398 = scalar_lea.vmem %s0, %s397
        $region48: #{tpu_custom_call.1} parent=43 // pred_fallthru
          _
        // Predicated region
        $region49: #{tpu_custom_call.1} parent=43 // pred_check
          %p399 = pneg %p85
        $region50: #{tpu_custom_call.1} parent=43 // pred_check_branch
          %401 = sbr.rel (%p399) target = $region52
        $region51: #{tpu_custom_call.1} parent=43 // pred_region
          %p402 = scmp.lt.s32.totalorder %s32, 1
          %s403 = scalar_select %p402, %s32, 1
          %s404 = smul.addr %s403, 2
          %s405 = smul.addr %s404, 8
          %s406 = scalar_lea.vmem %s1, %s405
        $region52: #{tpu_custom_call.1} parent=43 // pred_fallthru
          _
        // Predicated region
        $region53: #{tpu_custom_call.1} parent=43 // pred_check
          %p407 = pneg %p111
        $region54: #{tpu_custom_call.1} parent=43 // pred_check_branch
          %409 = sbr.rel (%p407) target = $region56
        $region55: #{tpu_custom_call.1} parent=43 // pred_region
          %p410 = scmp.lt.s32.totalorder %s32, 1
          %s411 = scalar_select %p410, %s32, 1
          %s412 = smul.addr %s411, 2
          %s413 = smul.addr %s412, 8
          %s414 = scalar_lea.vmem %s2, %s413
        $region56: #{tpu_custom_call.1} parent=43 // pred_fallthru
          _
        // Predicated region
        $region57: #{tpu_custom_call.1} parent=43 // pred_check
          %p415 = pneg %p139
        $region58: #{tpu_custom_call.1} parent=43 // pred_check_branch
          %417 = sbr.rel (%p415) target = $region60
        $region59: #{tpu_custom_call.1} parent=43 // pred_region
          %p418 = scmp.lt.s32.totalorder %s32, 1
          %s419 = scalar_select %p418, %s32, 1
          %p420 = scmp.lt.s32.totalorder %s33, 1
          %s421 = scalar_select %p420, %s33, 1
          %s422 = smul.addr %s419, 2
          %s423 = sadd.s32 %s421, %s422
          %s424 = smul.addr %s423, 4
          %s425 = scalar_lea.vmem %s3, %s424
        $region60: #{tpu_custom_call.1} parent=43 // pred_fallthru
          _
      $region44: #{tpu_custom_call.1} parent=5 // pred_fallthru
        _
      %p426 = scmp.le.s32.totalorder 1, %s25
      %p427 = scmp.lt.s32.totalorder %s25, 5
      %p428 = pnand %p426, %p427
      %p429 = pneg %p428
      // Predicated region
      $region61: #{tpu_custom_call.1} parent=5 // pred_check
        _
      $region62: #{tpu_custom_call.1} parent=5 // pred_check_branch
        %431 = sbr.rel (%p428) target = $region64
      $region63: #{tpu_custom_call.1} parent=5 // pred_region
        %s432 = ssub.s32 %s25, 1
        %p433 = scmp.lt.s32.totalorder %s34, 1
        %s434 = scalar_select %p433, %s34, 1
        %p435 = scmp.lt.s32.totalorder %s35, 1
        %s436 = scalar_select %p435, %s35, 1
        %s437 = smul.addr %s434, 2
        %s438 = sadd.s32 %s436, %s437
        %s439 = smul.addr %s438, 8
        %s440 = scalar_lea.vmem %s0, %s439
        %p441 = pneg %p65
        %p442 = pneg %p62
        %p443 = scmp.lt.s32.totalorder %s34, 1
        %s444 = scalar_select %p443, %s34, 1
        %s445 = smul.addr %s444, 2
        %s446 = smul.addr %s445, 8
        %s447 = scalar_lea.vmem %s1, %s446
        %p448 = pneg %p91
        %p449 = pneg %p88
        %p450 = scmp.lt.s32.totalorder %s34, 1
        %s451 = scalar_select %p450, %s34, 1
        %s452 = smul.addr %s451, 2
        %s453 = smul.addr %s452, 8
        %s454 = scalar_lea.vmem %s2, %s453
        %p455 = pneg %p117
        %p456 = pneg %p114
        %p457 = scmp.lt.s32.totalorder %s34, 1
        %s458 = scalar_select %p457, %s34, 1
        %p459 = scmp.lt.s32.totalorder %s35, 1
        %s460 = scalar_select %p459, %s35, 1
        %s461 = smul.addr %s458, 2
        %s462 = sadd.s32 %s460, %s461
        %s463 = smul.addr %s462, 4
        %s464 = scalar_lea.vmem %s3, %s463
        %p465 = pneg %p145
        %p466 = pneg %p142
        %p467 = pneg %p166
        %p468 = pneg %p163
        %p469 = pneg %p187
        %p470 = pneg %p184
        %p471 = pneg %p208
        %p472 = pneg %p205
        %p473 = pneg %p229
        %p474 = pneg %p226
        %p475 = pneg %p250
        %p476 = pneg %p247
        %p477 = pneg %p271
        %p478 = pneg %p268
        %p479 = pneg %p292
        %p480 = pneg %p289
        %p481 = pneg %p320
        %p482 = pneg %p317
        %s483 = sand.u32 %s307, 1
        %s484 = scalar_lea.sflag [#allocation5], %s483
        %s485 = sand.u32 %s307, 1
        %s486 = smul.addr %s485, 8
        %s487 = scalar_lea.vmem [#allocation4], %s486
        %p488 = pneg %p348
        %p489 = pneg %p345
        %s490 = sand.u32 %s335, 1
        %s491 = scalar_lea.sflag [#allocation7], %s490
        %s492 = sand.u32 %s335, 1
        %s493 = smul.addr %s492, 32
        %s494 = scalar_lea.vmem [#allocation6], %s493
        %p495 = scmp.lt.s32.totalorder %s34, 1
        %s496 = scalar_select %p495, %s34, 1
        %p497 = scmp.lt.s32.totalorder %s35, 1
        %s498 = scalar_select %p497, %s35, 1
        %s499 = smul.addr %s496, 2
        %s500 = sadd.s32 %s498, %s499
        %s501 = smul.addr %s500, 8
        %s502 = scalar_lea.vmem %s0, %s501
        %p503 = scmp.lt.s32.totalorder %s34, 1
        %s504 = scalar_select %p503, %s34, 1
        %s505 = smul.addr %s504, 2
        %s506 = smul.addr %s505, 8
        %s507 = scalar_lea.vmem %s1, %s506
        %p508 = scmp.lt.s32.totalorder %s34, 1
        %s509 = scalar_select %p508, %s34, 1
        %s510 = smul.addr %s509, 2
        %s511 = smul.addr %s510, 8
        %s512 = scalar_lea.vmem %s2, %s511
        %p513 = scmp.lt.s32.totalorder %s34, 1
        %s514 = scalar_select %p513, %s34, 1
        %p515 = scmp.lt.s32.totalorder %s35, 1
        %s516 = scalar_select %p515, %s35, 1
        %s517 = smul.addr %s514, 2
        %s518 = sadd.s32 %s516, %s517
        %s519 = smul.addr %s518, 4
        %s520 = scalar_lea.vmem %s3, %s519
        %p521 = scmp.eq.s32.totalorder %s35, 0
        // Predicated region
        $region65: #{tpu_custom_call.1} parent=63 // pred_check
          %p522 = pneg %p521
        $region66: #{tpu_custom_call.1} parent=63 // pred_check_branch
          %524 = sbr.rel (%p522) target = $region68
        $region67: #{tpu_custom_call.1} parent=63 // pred_region
          %v525 = vld [vmem:[%s507] sm:$0xff]
          %v526 = vld [vmem:[%s507 + $0x8] sm:$0xff]
          %v527 = vld [vmem:[%s512] sm:$0xff]
          %v528 = vld [vmem:[%s512 + $0x8] sm:$0xff]
          %v529 = vld [vmem:[%s5] sm:$0xff]
          %v530 = vld [vmem:[%s5 + $0x8] sm:$0xff]
          %v531 = vld [vmem:[%s5 + $0x10] sm:$0xff]
          %v532 = vld [vmem:[%s5 + $0x18] sm:$0xff]
          %vm533 = vcmask 261120
          %v535 = vsel %vm533, %v525, 0
          %v538 = vsel %vm533, %v526, 0
          %540 = vmatpush.msra.mxu0 0.0
          %541 = vmatpush.msra.mxu0 0.0
          %542 = vmatpush.msra.mxu0 0.0
          %543 = vmatpush.msra.mxu0 0.0
          %544 = vmatpush.msra.mxu0 0.0
          %545 = vmatpush.msra.mxu0 0.0
          %546 = vmatpush.msra.mxu0 0.0
          %547 = vmatpush.msra.mxu0 0.0
          %548 = vmatpush.msra.mxu0 0.0
          %549 = vmatpush.msra.mxu0 0.0
          %550 = vmatpush.msra.mxu0 0.0
          %551 = vmatpush.msra.mxu0 0.0
          %552 = vmatpush.msra.mxu0 %v532
          %553 = vmatpush.msra.mxu0 %v531
          %554 = vmatpush.msra.mxu0 %v530
          %555 = vmatpush.msra.mxu0 %v529
          %556 = vmatmul.f32.gmra.mxu0 %v535
          %v557 = vpop.f32.mrf.mxu0
          %v558 = vadd.f32 0.0, %v557
          %559 = vmatmul.f32.gmra.mxu0 %v538
          %v560 = vpop.f32.mrf.mxu0
          %v561 = vadd.f32 0.0, %v560
          %562 = vdwg.mxu0
          %vm563 = vcmask 64512
          %564 = vst.msk [vmem:[#allocation2] sm:$0xff] %vm563, %v558
          %565 = vst.msk [vmem:[#allocation2 + $0x8] sm:$0xff] %vm563, %v561
          %v566 = vld [vmem:[%s6] sm:$0xff]
          %v567 = vld [vmem:[%s6 + $0x8] sm:$0xff]
          %v568 = vld [vmem:[%s6 + $0x10] sm:$0xff]
          %v569 = vld [vmem:[%s6 + $0x18] sm:$0xff]
          %v571 = vsel %vm533, %v527, 0
          %v574 = vsel %vm533, %v528, 0
          %576 = vmatpush.msra.mxu0 0.0
          %577 = vmatpush.msra.mxu0 0.0
          %578 = vmatpush.msra.mxu0 0.0
          %579 = vmatpush.msra.mxu0 0.0
          %580 = vmatpush.msra.mxu0 0.0
          %581 = vmatpush.msra.mxu0 0.0
          %582 = vmatpush.msra.mxu0 0.0
          %583 = vmatpush.msra.mxu0 0.0
          %584 = vmatpush.msra.mxu0 0.0
          %585 = vmatpush.msra.mxu0 0.0
          %586 = vmatpush.msra.mxu0 0.0
          %587 = vmatpush.msra.mxu0 0.0
          %588 = vmatpush.msra.mxu0 %v569
          %589 = vmatpush.msra.mxu0 %v568
          %590 = vmatpush.msra.mxu0 %v567
          %591 = vmatpush.msra.mxu0 %v566
          %592 = vmatmul.f32.gmra.mxu0 %v571
          %v593 = vpop.f32.mrf.mxu0
          %v594 = vadd.f32 0.0, %v593
          %595 = vmatmul.f32.gmra.mxu0 %v574
          %v596 = vpop.f32.mrf.mxu0
          %v597 = vadd.f32 0.0, %v596
          %598 = vdwg.mxu0
          %599 = vst.msk [vmem:[#allocation3] sm:$0xff] %vm563, %v594
          %600 = vst.msk [vmem:[#allocation3 + $0x8] sm:$0xff] %vm563, %v597
          %s601 = scalar_lea.vmem %s5, 32
          %v602 = vld [vmem:[%s601] sm:$0xff]
          %v603 = vld [vmem:[%s601 + $0x8] sm:$0xff]
          %v604 = vld [vmem:[%s601 + $0x10] sm:$0xff]
          %v605 = vld [vmem:[%s601 + $0x18] sm:$0xff]
          %606 = vmatpush.msra.mxu0 0.0
          %607 = vmatpush.msra.mxu0 0.0
          %608 = vmatpush.msra.mxu0 0.0
          %609 = vmatpush.msra.mxu0 0.0
          %610 = vmatpush.msra.mxu0 0.0
          %611 = vmatpush.msra.mxu0 0.0
          %612 = vmatpush.msra.mxu0 0.0
          %613 = vmatpush.msra.mxu0 0.0
          %614 = vmatpush.msra.mxu0 0.0
          %615 = vmatpush.msra.mxu0 0.0
          %616 = vmatpush.msra.mxu0 0.0
          %617 = vmatpush.msra.mxu0 0.0
          %618 = vmatpush.msra.mxu0 %v605
          %619 = vmatpush.msra.mxu0 %v604
          %620 = vmatpush.msra.mxu0 %v603
          %621 = vmatpush.msra.mxu0 %v602
          %622 = vmatmul.f32.gmra.mxu0 %v535
          %v623 = vpop.f32.mrf.mxu0
          %v624 = vadd.f32 0.0, %v623
          %625 = vmatmul.f32.gmra.mxu0 %v538
          %v626 = vpop.f32.mrf.mxu0
          %v627 = vadd.f32 0.0, %v626
          %628 = vdwg.mxu0
          %s629 = scalar_lea.vmem [#allocation2], 16
          %630 = vst.msk [vmem:[%s629] sm:$0xff] %vm563, %v624
          %631 = vst.msk [vmem:[%s629 + $0x8] sm:$0xff] %vm563, %v627
          %s632 = scalar_lea.vmem %s6, 32
          %v633 = vld [vmem:[%s632] sm:$0xff]
          %v634 = vld [vmem:[%s632 + $0x8] sm:$0xff]
          %v635 = vld [vmem:[%s632 + $0x10] sm:$0xff]
          %v636 = vld [vmem:[%s632 + $0x18] sm:$0xff]
          %637 = vmatpush.msra.mxu0 0.0
          %638 = vmatpush.msra.mxu0 0.0
          %639 = vmatpush.msra.mxu0 0.0
          %640 = vmatpush.msra.mxu0 0.0
          %641 = vmatpush.msra.mxu0 0.0
          %642 = vmatpush.msra.mxu0 0.0
          %643 = vmatpush.msra.mxu0 0.0
          %644 = vmatpush.msra.mxu0 0.0
          %645 = vmatpush.msra.mxu0 0.0
          %646 = vmatpush.msra.mxu0 0.0
          %647 = vmatpush.msra.mxu0 0.0
          %648 = vmatpush.msra.mxu0 0.0
          %649 = vmatpush.msra.mxu0 %v636
          %650 = vmatpush.msra.mxu0 %v635
          %651 = vmatpush.msra.mxu0 %v634
          %652 = vmatpush.msra.mxu0 %v633
          %653 = vmatmul.f32.gmra.mxu0 %v571
          %v654 = vpop.f32.mrf.mxu0
          %v655 = vadd.f32 0.0, %v654
          %656 = vmatmul.f32.gmra.mxu0 %v574
          %v657 = vpop.f32.mrf.mxu0
          %v658 = vadd.f32 0.0, %v657
          %659 = vdwg.mxu0
          %s660 = scalar_lea.vmem [#allocation3], 16
          %661 = vst.msk [vmem:[%s660] sm:$0xff] %vm563, %v655
          %662 = vst.msk [vmem:[%s660 + $0x8] sm:$0xff] %vm563, %v658
          %s663 = scalar_lea.vmem %s5, 64
          %v664 = vld [vmem:[%s663] sm:$0xff]
          %v665 = vld [vmem:[%s663 + $0x8] sm:$0xff]
          %v666 = vld [vmem:[%s663 + $0x10] sm:$0xff]
          %v667 = vld [vmem:[%s663 + $0x18] sm:$0xff]
          %668 = vmatpush.msra.mxu0 0.0
          %669 = vmatpush.msra.mxu0 0.0
          %670 = vmatpush.msra.mxu0 0.0
          %671 = vmatpush.msra.mxu0 0.0
          %672 = vmatpush.msra.mxu0 0.0
          %673 = vmatpush.msra.mxu0 0.0
          %674 = vmatpush.msra.mxu0 0.0
          %675 = vmatpush.msra.mxu0 0.0
          %676 = vmatpush.msra.mxu0 0.0
          %677 = vmatpush.msra.mxu0 0.0
          %678 = vmatpush.msra.mxu0 0.0
          %679 = vmatpush.msra.mxu0 0.0
          %680 = vmatpush.msra.mxu0 %v667
          %681 = vmatpush.msra.mxu0 %v666
          %682 = vmatpush.msra.mxu0 %v665
          %683 = vmatpush.msra.mxu0 %v664
          %684 = vmatmul.f32.gmra.mxu0 %v535
          %v685 = vpop.f32.mrf.mxu0
          %v686 = vadd.f32 0.0, %v685
          %687 = vmatmul.f32.gmra.mxu0 %v538
          %v688 = vpop.f32.mrf.mxu0
          %v689 = vadd.f32 0.0, %v688
          %690 = vdwg.mxu0
          %s691 = scalar_lea.vmem [#allocation2], 32
          %692 = vst.msk [vmem:[%s691] sm:$0xff] %vm563, %v686
          %693 = vst.msk [vmem:[%s691 + $0x8] sm:$0xff] %vm563, %v689
          %s694 = scalar_lea.vmem %s6, 64
          %v695 = vld [vmem:[%s694] sm:$0xff]
          %v696 = vld [vmem:[%s694 + $0x8] sm:$0xff]
          %v697 = vld [vmem:[%s694 + $0x10] sm:$0xff]
          %v698 = vld [vmem:[%s694 + $0x18] sm:$0xff]
          %699 = vmatpush.msra.mxu0 0.0
          %700 = vmatpush.msra.mxu0 0.0
          %701 = vmatpush.msra.mxu0 0.0
          %702 = vmatpush.msra.mxu0 0.0
          %703 = vmatpush.msra.mxu0 0.0
          %704 = vmatpush.msra.mxu0 0.0
          %705 = vmatpush.msra.mxu0 0.0
          %706 = vmatpush.msra.mxu0 0.0
          %707 = vmatpush.msra.mxu0 0.0
          %708 = vmatpush.msra.mxu0 0.0
          %709 = vmatpush.msra.mxu0 0.0
          %710 = vmatpush.msra.mxu0 0.0
          %711 = vmatpush.msra.mxu0 %v698
          %712 = vmatpush.msra.mxu0 %v697
          %713 = vmatpush.msra.mxu0 %v696
          %714 = vmatpush.msra.mxu0 %v695
          %715 = vmatmul.f32.gmra.mxu0 %v571
          %v716 = vpop.f32.mrf.mxu0
          %v717 = vadd.f32 0.0, %v716
          %718 = vmatmul.f32.gmra.mxu0 %v574
          %v719 = vpop.f32.mrf.mxu0
          %v720 = vadd.f32 0.0, %v719
          %721 = vdwg.mxu0
          %s722 = scalar_lea.vmem [#allocation3], 32
          %723 = vst.msk [vmem:[%s722] sm:$0xff] %vm563, %v717
          %724 = vst.msk [vmem:[%s722 + $0x8] sm:$0xff] %vm563, %v720
          %s725 = scalar_lea.vmem %s5, 96
          %v726 = vld [vmem:[%s725] sm:$0xff]
          %v727 = vld [vmem:[%s725 + $0x8] sm:$0xff]
          %v728 = vld [vmem:[%s725 + $0x10] sm:$0xff]
          %v729 = vld [vmem:[%s725 + $0x18] sm:$0xff]
          %730 = vmatpush.msra.mxu0 0.0
          %731 = vmatpush.msra.mxu0 0.0
          %732 = vmatpush.msra.mxu0 0.0
          %733 = vmatpush.msra.mxu0 0.0
          %734 = vmatpush.msra.mxu0 0.0
          %735 = vmatpush.msra.mxu0 0.0
          %736 = vmatpush.msra.mxu0 0.0
          %737 = vmatpush.msra.mxu0 0.0
          %738 = vmatpush.msra.mxu0 0.0
          %739 = vmatpush.msra.mxu0 0.0
          %740 = vmatpush.msra.mxu0 0.0
          %741 = vmatpush.msra.mxu0 0.0
          %742 = vmatpush.msra.mxu0 %v729
          %743 = vmatpush.msra.mxu0 %v728
          %744 = vmatpush.msra.mxu0 %v727
          %745 = vmatpush.msra.mxu0 %v726
          %746 = vmatmul.f32.gmra.mxu0 %v535
          %v747 = vpop.f32.mrf.mxu0
          %v748 = vadd.f32 0.0, %v747
          %749 = vmatmul.f32.gmra.mxu0 %v538
          %v750 = vpop.f32.mrf.mxu0
          %v751 = vadd.f32 0.0, %v750
          %752 = vdwg.mxu0
          %s753 = scalar_lea.vmem [#allocation2], 48
          %754 = vst.msk [vmem:[%s753] sm:$0xff] %vm563, %v748
          %755 = vst.msk [vmem:[%s753 + $0x8] sm:$0xff] %vm563, %v751
          %s756 = scalar_lea.vmem %s6, 96
          %v757 = vld [vmem:[%s756] sm:$0xff]
          %v758 = vld [vmem:[%s756 + $0x8] sm:$0xff]
          %v759 = vld [vmem:[%s756 + $0x10] sm:$0xff]
          %v760 = vld [vmem:[%s756 + $0x18] sm:$0xff]
          %761 = vmatpush.msra.mxu0 0.0
          %762 = vmatpush.msra.mxu0 0.0
          %763 = vmatpush.msra.mxu0 0.0
          %764 = vmatpush.msra.mxu0 0.0
          %765 = vmatpush.msra.mxu0 0.0
          %766 = vmatpush.msra.mxu0 0.0
          %767 = vmatpush.msra.mxu0 0.0
          %768 = vmatpush.msra.mxu0 0.0
          %769 = vmatpush.msra.mxu0 0.0
          %770 = vmatpush.msra.mxu0 0.0
          %771 = vmatpush.msra.mxu0 0.0
          %772 = vmatpush.msra.mxu0 0.0
          %773 = vmatpush.msra.mxu0 %v760
          %774 = vmatpush.msra.mxu0 %v759
          %775 = vmatpush.msra.mxu0 %v758
          %776 = vmatpush.msra.mxu0 %v757
          %777 = vmatmul.f32.gmra.mxu0 %v571
          %v778 = vpop.f32.mrf.mxu0
          %v779 = vadd.f32 0.0, %v778
          %780 = vmatmul.f32.gmra.mxu0 %v574
          %v781 = vpop.f32.mrf.mxu0
          %v782 = vadd.f32 0.0, %v781
          %783 = vdwg.mxu0
          %s784 = scalar_lea.vmem [#allocation3], 48
          %785 = vst.msk [vmem:[%s784] sm:$0xff] %vm563, %v779
          %786 = vst.msk [vmem:[%s784 + $0x8] sm:$0xff] %vm563, %v782
        $region68: #{tpu_custom_call.1} parent=63 // pred_fallthru
          _
        %v787 = vld [vmem:[%s502] sm:$0xff]
        %v788 = vld [vmem:[%s520] sm:$0xf]
        %v789 = vunpack.c.l.bf16 %v788
        %v790 = vmul.f32 %v789, -1e+30
        %v791 = vld [vmem:[%s4] sm:$0xff]
        %v792 = vld [vmem:[%s4 + $0x8] sm:$0xff]
        %v793 = vld [vmem:[%s4 + $0x10] sm:$0xff]
        %v794 = vld [vmem:[%s4 + $0x18] sm:$0xff]
        %vm795 = vcmask 261120
        %v797 = vsel %vm795, %v787, 0
        %799 = vmatpush.msra.mxu0 0.0
        %800 = vmatpush.msra.mxu0 0.0
        %801 = vmatpush.msra.mxu0 0.0
        %802 = vmatpush.msra.mxu0 0.0
        %803 = vmatpush.msra.mxu0 0.0
        %804 = vmatpush.msra.mxu0 0.0
        %805 = vmatpush.msra.mxu0 0.0
        %806 = vmatpush.msra.mxu0 0.0
        %807 = vmatpush.msra.mxu0 0.0
        %808 = vmatpush.msra.mxu0 0.0
        %809 = vmatpush.msra.mxu0 0.0
        %810 = vmatpush.msra.mxu0 0.0
        %811 = vmatpush.msra.mxu0 %v794
        %812 = vmatpush.msra.mxu0 %v793
        %813 = vmatpush.msra.mxu0 %v792
        %814 = vmatpush.msra.mxu0 %v791
        %815 = vmatmul.f32.gmra.mxu0 %v797
        %v816 = vpop.f32.mrf.mxu0
        %v817 = vadd.f32 0.0, %v816
        %818 = vdwg.mxu0
        %v819 = vld [vmem:[#allocation2] sm:$0xff]
        %v820 = vld [vmem:[#allocation2 + $0x8] sm:$0xff]
        %vm821 = vcmask 64512
        %v823 = vsel %vm821, %v817, 0
        %v826 = vsel %vm821, %v819, 0
        %v829 = vsel %vm821, %v820, 0
        %831 = vmatpush.xpose.msra.mxu0 0.0
        %832 = vmatpush.xpose.msra.mxu0 0.0
        %833 = vmatpush.xpose.msra.mxu0 0.0
        %834 = vmatpush.xpose.msra.mxu0 0.0
        %835 = vmatpush.xpose.msra.mxu0 0.0
        %836 = vmatpush.xpose.msra.mxu0 0.0
        %837 = vmatpush.xpose.msra.mxu0 0.0
        %838 = vmatpush.xpose.msra.mxu0 0.0
        %839 = vmatpush.xpose.msra.mxu0 0.0
        %840 = vmatpush.xpose.msra.mxu0 0.0
        %841 = vmatpush.xpose.msra.mxu0 0.0
        %842 = vmatpush.xpose.msra.mxu0 0.0
        %843 = vmatpush.xpose.msra.mxu0 0.0
        %844 = vmatpush.xpose.msra.mxu0 0.0
        %845 = vmatpush.xpose.msra.mxu0 %v829
        %846 = vmatpush.xpose.msra.mxu0 %v826
        %847 = vmatmul.f32.gmra.mxu0 %v823
        %v848 = vpop.f32.mrf.mxu0
        %v849 = vadd.f32 %v790, %v848
        %850 = vdwg.mxu0
        %vm851 = vcmask 130048
        %v852 = vsel %vm851, %v849, -inf
        %853 = vmax.xlane.f32.xlu0 %v852
        %v854 = vpop.xlane.xlu0 %853
        %v855 = vsub.f32 %v849, %v854
        %v856 = vmul.f32 %v855, 1.442695
        %v857 = vpow.pop %v856
        %v858 = vsel %vm851, %v857, 0.0
        %859 = vadd.xlane.f32.xlu0 %v858
        %v860 = vpop.xlane.xlu0 %859
        %v861 = vrcp.pop %v860
        %v862 = vmul.f32 %v860, %v861
        %v863 = vsub.f32 1.0, %v862
        %v864 = vmul.f32 %v861, %v863
        %v865 = vadd.f32 %v861, %v864
        %vm866 = vweird.f32 %v860
        %vm867 = vweird.f32 %v861
        %vm868 = vmor %vm866, %vm867
        %v869 = vsel %vm868, %v861, %v865
        %v870 = vand.u32 2147483647, %v860
        %vm871 = vcmp.eq.f32.partialorder %v870, 8.507059e+37
        %v872 = vand.u32 %v860, 2147483648
        %v873 = vor.u32 1.1754944e-38, %v872
        %v874 = vsel %vm871, %v873, %v869
        %v875 = vmul.f32 %v857, %v874
        %876 = vst.msk [vmem:[%s494] sm:$0xff] %vm851, %v875
        %v877 = vld [vmem:[#allocation3] sm:$0xff]
        %v878 = vld [vmem:[#allocation3 + $0x8] sm:$0xff]
        %v880 = vsel %vm851, %v875, 0
        %882 = vmatpush.msra.mxu0 0.0
        %883 = vmatpush.msra.mxu0 0.0
        %884 = vmatpush.msra.mxu0 0.0
        %885 = vmatpush.msra.mxu0 0.0
        %886 = vmatpush.msra.mxu0 0.0
        %887 = vmatpush.msra.mxu0 0.0
        %888 = vmatpush.msra.mxu0 0.0
        %889 = vmatpush.msra.mxu0 0.0
        %890 = vmatpush.msra.mxu0 0.0
        %891 = vmatpush.msra.mxu0 0.0
        %892 = vmatpush.msra.mxu0 0.0
        %893 = vmatpush.msra.mxu0 0.0
        %894 = vmatpush.msra.mxu0 0.0
        %895 = vmatpush.msra.mxu0 0.0
        %896 = vmatpush.msra.mxu0 %v878
        %897 = vmatpush.msra.mxu0 %v877
        %898 = vmatmul.f32.gmra.mxu0 %v880
        %v899 = vpop.f32.mrf.mxu0
        %v900 = vadd.f32 0.0, %v899
        %901 = vdwg.mxu0
        %v902 = vld [vmem:[%s7] sm:$0xff]
        %s903 = scalar_lea.vmem %s4, 32
        %v904 = vld [vmem:[%s903] sm:$0xff]
        %v905 = vld [vmem:[%s903 + $0x8] sm:$0xff]
        %v906 = vld [vmem:[%s903 + $0x10] sm:$0xff]
        %v907 = vld [vmem:[%s903 + $0x18] sm:$0xff]
        %908 = vmatpush.msra.mxu0 0.0
        %909 = vmatpush.msra.mxu0 0.0
        %910 = vmatpush.msra.mxu0 0.0
        %911 = vmatpush.msra.mxu0 0.0
        %912 = vmatpush.msra.mxu0 0.0
        %913 = vmatpush.msra.mxu0 0.0
        %914 = vmatpush.msra.mxu0 0.0
        %915 = vmatpush.msra.mxu0 0.0
        %916 = vmatpush.msra.mxu0 0.0
        %917 = vmatpush.msra.mxu0 0.0
        %918 = vmatpush.msra.mxu0 0.0
        %919 = vmatpush.msra.mxu0 0.0
        %920 = vmatpush.msra.mxu0 %v907
        %921 = vmatpush.msra.mxu0 %v906
        %922 = vmatpush.msra.mxu0 %v905
        %923 = vmatpush.msra.mxu0 %v904
        %924 = vmatmul.f32.gmra.mxu0 %v797
        %v925 = vpop.f32.mrf.mxu0
        %v926 = vadd.f32 0.0, %v925
        %927 = vdwg.mxu0
        %s928 = scalar_lea.vmem [#allocation2], 16
        %v929 = vld [vmem:[%s928] sm:$0xff]
        %v930 = vld [vmem:[%s928 + $0x8] sm:$0xff]
        %v932 = vsel %vm821, %v926, 0
        %v935 = vsel %vm821, %v929, 0
        %v938 = vsel %vm821, %v930, 0
        %940 = vmatpush.xpose.msra.mxu0 0.0
        %941 = vmatpush.xpose.msra.mxu0 0.0
        %942 = vmatpush.xpose.msra.mxu0 0.0
        %943 = vmatpush.xpose.msra.mxu0 0.0
        %944 = vmatpush.xpose.msra.mxu0 0.0
        %945 = vmatpush.xpose.msra.mxu0 0.0
        %946 = vmatpush.xpose.msra.mxu0 0.0
        %947 = vmatpush.xpose.msra.mxu0 0.0
        %948 = vmatpush.xpose.msra.mxu0 0.0
        %949 = vmatpush.xpose.msra.mxu0 0.0
        %950 = vmatpush.xpose.msra.mxu0 0.0
        %951 = vmatpush.xpose.msra.mxu0 0.0
        %952 = vmatpush.xpose.msra.mxu0 0.0
        %953 = vmatpush.xpose.msra.mxu0 0.0
        %954 = vmatpush.xpose.msra.mxu0 %v938
        %955 = vmatpush.xpose.msra.mxu0 %v935
        %956 = vmatmul.f32.gmra.mxu0 %v932
        %v957 = vpop.f32.mrf.mxu0
        %v958 = vadd.f32 %v790, %v957
        %959 = vdwg.mxu0
        %v960 = vsel %vm851, %v958, -inf
        %961 = vmax.xlane.f32.xlu0 %v960
        %v962 = vpop.xlane.xlu0 %961
        %v963 = vsub.f32 %v958, %v962
        %v964 = vmul.f32 %v963, 1.442695
        %v965 = vpow.pop %v964
        %v966 = vsel %vm851, %v965, 0.0
        %967 = vadd.xlane.f32.xlu0 %v966
        %v968 = vpop.xlane.xlu0 %967
        %v969 = vrcp.pop %v968
        %v970 = vmul.f32 %v968, %v969
        %v971 = vsub.f32 1.0, %v970
        %v972 = vmul.f32 %v969, %v971
        %v973 = vadd.f32 %v969, %v972
        %vm974 = vweird.f32 %v968
        %vm975 = vweird.f32 %v969
        %vm976 = vmor %vm974, %vm975
        %v977 = vsel %vm976, %v969, %v973
        %v978 = vand.u32 2147483647, %v968
        %vm979 = vcmp.eq.f32.partialorder %v978, 8.507059e+37
        %v980 = vand.u32 %v968, 2147483648
        %v981 = vor.u32 1.1754944e-38, %v980
        %v982 = vsel %vm979, %v981, %v977
        %v983 = vmul.f32 %v965, %v982
        %s984 = scalar_lea.vmem %s494, 8 [#allocation6]
        %985 = vst.msk [vmem:[%s984] sm:$0xff] %vm851, %v983
        %s986 = scalar_lea.vmem [#allocation3], 16
        %v987 = vld [vmem:[%s986] sm:$0xff]
        %v988 = vld [vmem:[%s986 + $0x8] sm:$0xff]
        %v990 = vsel %vm851, %v983, 0
        %992 = vmatpush.msra.mxu0 0.0
        %993 = vmatpush.msra.mxu0 0.0
        %994 = vmatpush.msra.mxu0 0.0
        %995 = vmatpush.msra.mxu0 0.0
        %996 = vmatpush.msra.mxu0 0.0
        %997 = vmatpush.msra.mxu0 0.0
        %998 = vmatpush.msra.mxu0 0.0
        %999 = vmatpush.msra.mxu0 0.0
        %1000 = vmatpush.msra.mxu0 0.0
        %1001 = vmatpush.msra.mxu0 0.0
        %1002 = vmatpush.msra.mxu0 0.0
        %1003 = vmatpush.msra.mxu0 0.0
        %1004 = vmatpush.msra.mxu0 0.0
        %1005 = vmatpush.msra.mxu0 0.0
        %1006 = vmatpush.msra.mxu0 %v988
        %1007 = vmatpush.msra.mxu0 %v987
        %1008 = vmatmul.f32.gmra.mxu0 %v990
        %v1009 = vpop.f32.mrf.mxu0
        %v1010 = vadd.f32 0.0, %v1009
        %1011 = vdwg.mxu0
        %s1012 = scalar_lea.vmem %s7, 8
        %v1013 = vld [vmem:[%s1012] sm:$0xff]
        %v1015 = vsel %vm821, %v1010, 0
        %1017 = vmatpush.msra.mxu0 0.0
        %1018 = vmatpush.msra.mxu0 0.0
        %1019 = vmatpush.msra.mxu0 0.0
        %1020 = vmatpush.msra.mxu0 0.0
        %1021 = vmatpush.msra.mxu0 0.0
        %1022 = vmatpush.msra.mxu0 0.0
        %1023 = vmatpush.msra.mxu0 0.0
        %1024 = vmatpush.msra.mxu0 0.0
        %1025 = vmatpush.msra.mxu0 0.0
        %1026 = vmatpush.msra.mxu0 0.0
        %1027 = vmatpush.msra.mxu0 0.0
        %1028 = vmatpush.msra.mxu0 0.0
        %1029 = vmatpush.msra.mxu0 0.0
        %1030 = vmatpush.msra.mxu0 0.0
        %1031 = vmatpush.msra.mxu0 0.0
        %1032 = vmatpush.msra.mxu0 %v1013
        %1033 = vmatmul.f32.gmra.mxu0 %v1015
        %v1034 = vpop.f32.mrf.mxu0
        %v1035 = vadd.f32 0.0, %v1034
        %1036 = vdwg.mxu0
        %v1038 = vsel %vm821, %v900, 0
        %1040 = vmatpush.msra.mxu0 0.0
        %1041 = vmatpush.msra.mxu0 0.0
        %1042 = vmatpush.msra.mxu0 0.0
        %1043 = vmatpush.msra.mxu0 0.0
        %1044 = vmatpush.msra.mxu0 0.0
        %1045 = vmatpush.msra.mxu0 0.0
        %1046 = vmatpush.msra.mxu0 0.0
        %1047 = vmatpush.msra.mxu0 0.0
        %1048 = vmatpush.msra.mxu0 0.0
        %1049 = vmatpush.msra.mxu0 0.0
        %1050 = vmatpush.msra.mxu0 0.0
        %1051 = vmatpush.msra.mxu0 0.0
        %1052 = vmatpush.msra.mxu0 0.0
        %1053 = vmatpush.msra.mxu0 0.0
        %1054 = vmatpush.msra.mxu0 0.0
        %1055 = vmatpush.msra.mxu0 %v902
        %1056 = vmatmul.f32.gmra.mxu0 %v1038
        %v1057 = vpop.f32.mrf.mxu0
        %v1058 = vadd.f32 %v1035, %v1057
        %1059 = vdwg.mxu0
        %s1060 = scalar_lea.vmem %s4, 64
        %v1061 = vld [vmem:[%s1060] sm:$0xff]
        %v1062 = vld [vmem:[%s1060 + $0x8] sm:$0xff]
        %v1063 = vld [vmem:[%s1060 + $0x10] sm:$0xff]
        %v1064 = vld [vmem:[%s1060 + $0x18] sm:$0xff]
        %1065 = vmatpush.msra.mxu0 0.0
        %1066 = vmatpush.msra.mxu0 0.0
        %1067 = vmatpush.msra.mxu0 0.0
        %1068 = vmatpush.msra.mxu0 0.0
        %1069 = vmatpush.msra.mxu0 0.0
        %1070 = vmatpush.msra.mxu0 0.0
        %1071 = vmatpush.msra.mxu0 0.0
        %1072 = vmatpush.msra.mxu0 0.0
        %1073 = vmatpush.msra.mxu0 0.0
        %1074 = vmatpush.msra.mxu0 0.0
        %1075 = vmatpush.msra.mxu0 0.0
        %1076 = vmatpush.msra.mxu0 0.0
        %1077 = vmatpush.msra.mxu0 %v1064
        %1078 = vmatpush.msra.mxu0 %v1063
        %1079 = vmatpush.msra.mxu0 %v1062
        %1080 = vmatpush.msra.mxu0 %v1061
        %1081 = vmatmul.f32.gmra.mxu0 %v797
        %v1082 = vpop.f32.mrf.mxu0
        %v1083 = vadd.f32 0.0, %v1082
        %1084 = vdwg.mxu0
        %s1085 = scalar_lea.vmem [#allocation2], 32
        %v1086 = vld [vmem:[%s1085] sm:$0xff]
        %v1087 = vld [vmem:[%s1085 + $0x8] sm:$0xff]
        %v1089 = vsel %vm821, %v1083, 0
        %v1092 = vsel %vm821, %v1086, 0
        %v1095 = vsel %vm821, %v1087, 0
        %1097 = vmatpush.xpose.msra.mxu0 0.0
        %1098 = vmatpush.xpose.msra.mxu0 0.0
        %1099 = vmatpush.xpose.msra.mxu0 0.0
        %1100 = vmatpush.xpose.msra.mxu0 0.0
        %1101 = vmatpush.xpose.msra.mxu0 0.0
        %1102 = vmatpush.xpose.msra.mxu0 0.0
        %1103 = vmatpush.xpose.msra.mxu0 0.0
        %1104 = vmatpush.xpose.msra.mxu0 0.0
        %1105 = vmatpush.xpose.msra.mxu0 0.0
        %1106 = vmatpush.xpose.msra.mxu0 0.0
        %1107 = vmatpush.xpose.msra.mxu0 0.0
        %1108 = vmatpush.xpose.msra.mxu0 0.0
        %1109 = vmatpush.xpose.msra.mxu0 0.0
        %1110 = vmatpush.xpose.msra.mxu0 0.0
        %1111 = vmatpush.xpose.msra.mxu0 %v1095
        %1112 = vmatpush.xpose.msra.mxu0 %v1092
        %1113 = vmatmul.f32.gmra.mxu0 %v1089
        %v1114 = vpop.f32.mrf.mxu0
        %v1115 = vadd.f32 %v790, %v1114
        %1116 = vdwg.mxu0
        %v1117 = vsel %vm851, %v1115, -inf
        %1118 = vmax.xlane.f32.xlu0 %v1117
        %v1119 = vpop.xlane.xlu0 %1118
        %v1120 = vsub.f32 %v1115, %v1119
        %v1121 = vmul.f32 %v1120, 1.442695
        %v1122 = vpow.pop %v1121
        %v1123 = vsel %vm851, %v1122, 0.0
        %1124 = vadd.xlane.f32.xlu0 %v1123
        %v1125 = vpop.xlane.xlu0 %1124
        %v1126 = vrcp.pop %v1125
        %v1127 = vmul.f32 %v1125, %v1126
        %v1128 = vsub.f32 1.0, %v1127
        %v1129 = vmul.f32 %v1126, %v1128
        %v1130 = vadd.f32 %v1126, %v1129
        %vm1131 = vweird.f32 %v1125
        %vm1132 = vweird.f32 %v1126
        %vm1133 = vmor %vm1131, %vm1132
        %v1134 = vsel %vm1133, %v1126, %v1130
        %v1135 = vand.u32 2147483647, %v1125
        %vm1136 = vcmp.eq.f32.partialorder %v1135, 8.507059e+37
        %v1137 = vand.u32 %v1125, 2147483648
        %v1138 = vor.u32 1.1754944e-38, %v1137
        %v1139 = vsel %vm1136, %v1138, %v1134
        %v1140 = vmul.f32 %v1122, %v1139
        %s1141 = scalar_lea.vmem %s494, 16 [#allocation6]
        %1142 = vst.msk [vmem:[%s1141] sm:$0xff] %vm851, %v1140
        %s1143 = scalar_lea.vmem [#allocation3], 32
        %v1144 = vld [vmem:[%s1143] sm:$0xff]
        %v1145 = vld [vmem:[%s1143 + $0x8] sm:$0xff]
        %v1147 = vsel %vm851, %v1140, 0
        %1149 = vmatpush.msra.mxu0 0.0
        %1150 = vmatpush.msra.mxu0 0.0
        %1151 = vmatpush.msra.mxu0 0.0
        %1152 = vmatpush.msra.mxu0 0.0
        %1153 = vmatpush.msra.mxu0 0.0
        %1154 = vmatpush.msra.mxu0 0.0
        %1155 = vmatpush.msra.mxu0 0.0
        %1156 = vmatpush.msra.mxu0 0.0
        %1157 = vmatpush.msra.mxu0 0.0
        %1158 = vmatpush.msra.mxu0 0.0
        %1159 = vmatpush.msra.mxu0 0.0
        %1160 = vmatpush.msra.mxu0 0.0
        %1161 = vmatpush.msra.mxu0 0.0
        %1162 = vmatpush.msra.mxu0 0.0
        %1163 = vmatpush.msra.mxu0 %v1145
        %1164 = vmatpush.msra.mxu0 %v1144
        %1165 = vmatmul.f32.gmra.mxu0 %v1147
        %v1166 = vpop.f32.mrf.mxu0
        %v1167 = vadd.f32 0.0, %v1166
        %1168 = vdwg.mxu0
        %s1169 = scalar_lea.vmem %s7, 16
        %v1170 = vld [vmem:[%s1169] sm:$0xff]
        %v1172 = vsel %vm821, %v1167, 0
        %1174 = vmatpush.msra.mxu0 0.0
        %1175 = vmatpush.msra.mxu0 0.0
        %1176 = vmatpush.msra.mxu0 0.0
        %1177 = vmatpush.msra.mxu0 0.0
        %1178 = vmatpush.msra.mxu0 0.0
        %1179 = vmatpush.msra.mxu0 0.0
        %1180 = vmatpush.msra.mxu0 0.0
        %1181 = vmatpush.msra.mxu0 0.0
        %1182 = vmatpush.msra.mxu0 0.0
        %1183 = vmatpush.msra.mxu0 0.0
        %1184 = vmatpush.msra.mxu0 0.0
        %1185 = vmatpush.msra.mxu0 0.0
        %1186 = vmatpush.msra.mxu0 0.0
        %1187 = vmatpush.msra.mxu0 0.0
        %1188 = vmatpush.msra.mxu0 0.0
        %1189 = vmatpush.msra.mxu0 %v1170
        %1190 = vmatmul.f32.gmra.mxu0 %v1172
        %v1191 = vpop.f32.mrf.mxu0
        %v1192 = vadd.f32 0.0, %v1191
        %1193 = vdwg.mxu0
        %v1194 = vadd.f32 %v1058, %v1192
        %s1195 = scalar_lea.vmem %s4, 96
        %v1196 = vld [vmem:[%s1195] sm:$0xff]
        %v1197 = vld [vmem:[%s1195 + $0x8] sm:$0xff]
        %v1198 = vld [vmem:[%s1195 + $0x10] sm:$0xff]
        %v1199 = vld [vmem:[%s1195 + $0x18] sm:$0xff]
        %1200 = vmatpush.msra.mxu0 0.0
        %1201 = vmatpush.msra.mxu0 0.0
        %1202 = vmatpush.msra.mxu0 0.0
        %1203 = vmatpush.msra.mxu0 0.0
        %1204 = vmatpush.msra.mxu0 0.0
        %1205 = vmatpush.msra.mxu0 0.0
        %1206 = vmatpush.msra.mxu0 0.0
        %1207 = vmatpush.msra.mxu0 0.0
        %1208 = vmatpush.msra.mxu0 0.0
        %1209 = vmatpush.msra.mxu0 0.0
        %1210 = vmatpush.msra.mxu0 0.0
        %1211 = vmatpush.msra.mxu0 0.0
        %1212 = vmatpush.msra.mxu0 %v1199
        %1213 = vmatpush.msra.mxu0 %v1198
        %1214 = vmatpush.msra.mxu0 %v1197
        %1215 = vmatpush.msra.mxu0 %v1196
        %1216 = vmatmul.f32.gmra.mxu0 %v797
        %v1217 = vpop.f32.mrf.mxu0
        %v1218 = vadd.f32 0.0, %v1217
        %1219 = vdwg.mxu0
        %s1220 = scalar_lea.vmem [#allocation2], 48
        %v1221 = vld [vmem:[%s1220] sm:$0xff]
        %v1222 = vld [vmem:[%s1220 + $0x8] sm:$0xff]
        %v1224 = vsel %vm821, %v1218, 0
        %v1227 = vsel %vm821, %v1221, 0
        %v1230 = vsel %vm821, %v1222, 0
        %1232 = vmatpush.xpose.msra.mxu0 0.0
        %1233 = vmatpush.xpose.msra.mxu0 0.0
        %1234 = vmatpush.xpose.msra.mxu0 0.0
        %1235 = vmatpush.xpose.msra.mxu0 0.0
        %1236 = vmatpush.xpose.msra.mxu0 0.0
        %1237 = vmatpush.xpose.msra.mxu0 0.0
        %1238 = vmatpush.xpose.msra.mxu0 0.0
        %1239 = vmatpush.xpose.msra.mxu0 0.0
        %1240 = vmatpush.xpose.msra.mxu0 0.0
        %1241 = vmatpush.xpose.msra.mxu0 0.0
        %1242 = vmatpush.xpose.msra.mxu0 0.0
        %1243 = vmatpush.xpose.msra.mxu0 0.0
        %1244 = vmatpush.xpose.msra.mxu0 0.0
        %1245 = vmatpush.xpose.msra.mxu0 0.0
        %1246 = vmatpush.xpose.msra.mxu0 %v1230
        %1247 = vmatpush.xpose.msra.mxu0 %v1227
        %1248 = vmatmul.f32.gmra.mxu0 %v1224
        %v1249 = vpop.f32.mrf.mxu0
        %v1250 = vadd.f32 %v790, %v1249
        %1251 = vdwg.mxu0
        %v1252 = vsel %vm851, %v1250, -inf
        %1253 = vmax.xlane.f32.xlu0 %v1252
        %v1254 = vpop.xlane.xlu0 %1253
        %v1255 = vsub.f32 %v1250, %v1254
        %v1256 = vmul.f32 %v1255, 1.442695
        %v1257 = vpow.pop %v1256
        %v1258 = vsel %vm851, %v1257, 0.0
        %1259 = vadd.xlane.f32.xlu0 %v1258
        %v1260 = vpop.xlane.xlu0 %1259
        %v1261 = vrcp.pop %v1260
        %v1262 = vmul.f32 %v1260, %v1261
        %v1263 = vsub.f32 1.0, %v1262
        %v1264 = vmul.f32 %v1261, %v1263
        %v1265 = vadd.f32 %v1261, %v1264
        %vm1266 = vweird.f32 %v1260
        %vm1267 = vweird.f32 %v1261
        %vm1268 = vmor %vm1266, %vm1267
        %v1269 = vsel %vm1268, %v1261, %v1265
        %v1270 = vand.u32 2147483647, %v1260
        %vm1271 = vcmp.eq.f32.partialorder %v1270, 8.507059e+37
        %v1272 = vand.u32 %v1260, 2147483648
        %v1273 = vor.u32 1.1754944e-38, %v1272
        %v1274 = vsel %vm1271, %v1273, %v1269
        %v1275 = vmul.f32 %v1257, %v1274
        %s1276 = scalar_lea.vmem %s494, 24 [#allocation6]
        %1277 = vst.msk [vmem:[%s1276] sm:$0xff] %vm851, %v1275
        %s1278 = scalar_lea.vmem [#allocation3], 48
        %v1279 = vld [vmem:[%s1278] sm:$0xff]
        %v1280 = vld [vmem:[%s1278 + $0x8] sm:$0xff]
        %v1282 = vsel %vm851, %v1275, 0
        %1284 = vmatpush.msra.mxu0 0.0
        %1285 = vmatpush.msra.mxu0 0.0
        %1286 = vmatpush.msra.mxu0 0.0
        %1287 = vmatpush.msra.mxu0 0.0
        %1288 = vmatpush.msra.mxu0 0.0
        %1289 = vmatpush.msra.mxu0 0.0
        %1290 = vmatpush.msra.mxu0 0.0
        %1291 = vmatpush.msra.mxu0 0.0
        %1292 = vmatpush.msra.mxu0 0.0
        %1293 = vmatpush.msra.mxu0 0.0
        %1294 = vmatpush.msra.mxu0 0.0
        %1295 = vmatpush.msra.mxu0 0.0
        %1296 = vmatpush.msra.mxu0 0.0
        %1297 = vmatpush.msra.mxu0 0.0
        %1298 = vmatpush.msra.mxu0 %v1280
        %1299 = vmatpush.msra.mxu0 %v1279
        %1300 = vmatmul.f32.gmra.mxu0 %v1282
        %v1301 = vpop.f32.mrf.mxu0
        %v1302 = vadd.f32 0.0, %v1301
        %1303 = vdwg.mxu0
        %s1304 = scalar_lea.vmem %s7, 24
        %v1305 = vld [vmem:[%s1304] sm:$0xff]
        %v1307 = vsel %vm821, %v1302, 0
        %1309 = vmatpush.msra.mxu0 0.0
        %1310 = vmatpush.msra.mxu0 0.0
        %1311 = vmatpush.msra.mxu0 0.0
        %1312 = vmatpush.msra.mxu0 0.0
        %1313 = vmatpush.msra.mxu0 0.0
        %1314 = vmatpush.msra.mxu0 0.0
        %1315 = vmatpush.msra.mxu0 0.0
        %1316 = vmatpush.msra.mxu0 0.0
        %1317 = vmatpush.msra.mxu0 0.0
        %1318 = vmatpush.msra.mxu0 0.0
        %1319 = vmatpush.msra.mxu0 0.0
        %1320 = vmatpush.msra.mxu0 0.0
        %1321 = vmatpush.msra.mxu0 0.0
        %1322 = vmatpush.msra.mxu0 0.0
        %1323 = vmatpush.msra.mxu0 0.0
        %1324 = vmatpush.msra.mxu0 %v1305
        %1325 = vmatmul.f32.gmra.mxu0 %v1307
        %v1326 = vpop.f32.mrf.mxu0
        %v1327 = vadd.f32 0.0, %v1326
        %1328 = vdwg.mxu0
        %v1329 = vadd.f32 %v1194, %v1327
        %v1330 = vld [vmem:[%s8] sm:$0x1]
        %v1332 = vperm.slane %v1330, 0
        %v1334 = vadd.f32 %v1329, %v1332
        %v1335 = vadd.f32 %v1334, %v787
        %v1336 = vsel %vm795, %v1335, 0.0
        %1337 = vadd.xlane.f32.xlu0 %v1336
        %v1338 = vpop.xlane.xlu0 %1337
        %v1339 = vrcp.pop 32.0
        %v1340 = vmul.f32 32.0, %v1339
        %v1341 = vsub.f32 1.0, %v1340
        %v1342 = vmul.f32 %v1339, %v1341
        %v1343 = vadd.f32 %v1339, %v1342
        %vm1344 = vweird.f32 %v1339
        %v1345 = vsel %vm1344, %v1339, %v1343
        %v1346 = vmul.f32 %v1338, %v1345
        %v1347 = vsub.f32 %v1335, %v1346
        %v1348 = vmul.f32 %v1347, %v1347
        %v1349 = vsel %vm795, %v1348, 0.0
        %1350 = vadd.xlane.f32.xlu0 %v1349
        %v1351 = vpop.xlane.xlu0 %1350
        %v1352 = vrcp.pop 31.0
        %v1353 = vmul.f32 31.0, %v1352
        %v1354 = vsub.f32 1.0, %v1353
        %v1355 = vmul.f32 %v1352, %v1354
        %v1356 = vadd.f32 %v1352, %v1355
        %vm1357 = vweird.f32 %v1352
        %v1358 = vsel %vm1357, %v1352, %v1356
        %v1359 = vmul.f32 %v1351, %v1358
        %v1360 = vrsqrt.pop %v1359
        %v1361 = vmul.f32 %v1360, %v1359
        %v1362 = vmul.f32 %v1361, %v1360
        %v1363 = vmul.f32 0.5, %v1362
        %v1364 = vsub.f32 1.5, %v1363
        %v1365 = vmul.f32 %v1360, %v1364
        %v1366 = vmul.f32 %v1359, %v1365
        %vm1367 = vcmp.eq.f32.partialorder %v1359, inf
        %v1368 = vsel %vm1367, %v1359, %v1366
        %vm1369 = vcmp.eq.f32.partialorder %v1359, 0.0
        %v1370 = vand.u32 %v1359, 2147483648
        %v1371 = vsel %vm1369, %v1370, %v1368
        %v1372 = vadd.f32 %v1371, 0.001
        %v1373 = vrcp.pop %v1372
        %v1374 = vmul.f32 %v1372, %v1373
        %v1375 = vsub.f32 1.0, %v1374
        %v1376 = vmul.f32 %v1373, %v1375
        %v1377 = vadd.f32 %v1373, %v1376
        %vm1378 = vweird.f32 %v1372
        %vm1379 = vweird.f32 %v1373
        %vm1380 = vmor %vm1378, %vm1379
        %v1381 = vsel %vm1380, %v1373, %v1377
        %v1382 = vand.u32 2147483647, %v1372
        %vm1383 = vcmp.eq.f32.partialorder %v1382, 8.507059e+37
        %v1384 = vand.u32 %v1372, 2147483648
        %v1385 = vor.u32 1.1754944e-38, %v1384
        %v1386 = vsel %vm1383, %v1385, %v1381
        %v1387 = vmul.f32 %v1347, %v1386
        %v1388 = vld [vmem:[%s9] sm:$0x1]
        %v1390 = vperm.slane %v1388, 0
        %v1392 = vmul.f32 %v1387, %v1390
        %v1393 = vld [vmem:[%s10] sm:$0x1]
        %v1395 = vperm.slane %v1393, 0
        %v1397 = vadd.f32 %v1392, %v1395
        %1398 = vst.msk [vmem:[%s487] sm:$0xff] %vm795, %v1397
        %s1399 = sand.u32 %s307, 1
        %s1400 = scalar_lea.sflag [#allocation5], %s1399
        %s1401 = sand.u32 %s307, 1
        %s1402 = smul.addr %s1401, 8
        %s1403 = scalar_lea.vmem [#allocation4], %s1402
        %s1404 = sand.u32 %s335, 1
        %s1405 = scalar_lea.sflag [#allocation7], %s1404
        %s1406 = sand.u32 %s335, 1
        %s1407 = smul.addr %s1406, 32
        %s1408 = scalar_lea.vmem [#allocation6], %s1407
        // Predicated region
        $region69: #{tpu_custom_call.1} parent=63 // pred_check
          %p1409 = pneg %p317
        $region70: #{tpu_custom_call.1} parent=63 // pred_check_branch
          %1411 = sbr.rel (%p1409) target = $region72
        $region71: #{tpu_custom_call.1} parent=63 // pred_region
          %1413 = vsyncadd %s1400, 0
          %s1414 = smul.addr %s34, 2
          %s1415 = sadd.s32 %s35, %s1414
          %s1416 = smul.addr %s1415, 8
          %s1417 = scalar_lea.hbm %s11, %s1416
          %s1419 = sshll.u32 %s1403, 4
          %s1420 = int_to_ptr.vmem [resolvable:$true] %s1419
          %s1421 = sshll.u32 %s1417, 4
          %s1422 = int_to_ptr.hbm [resolvable:$true] %s1421
          %1424 = dma.vmem_to_hbm [thread:$0]  %s1420, 128, %s1422, %s1400
        $region72: #{tpu_custom_call.1} parent=63 // pred_fallthru
          _
        // Predicated region
        $region73: #{tpu_custom_call.1} parent=63 // pred_check
          %p1425 = pneg %p345
        $region74: #{tpu_custom_call.1} parent=63 // pred_check_branch
          %1427 = sbr.rel (%p1425) target = $region76
        $region75: #{tpu_custom_call.1} parent=63 // pred_region
          %1429 = vsyncadd %s1405, 0
          %s1430 = smul.addr %s34, 2
          %s1431 = sadd.s32 %s35, %s1430
          %s1432 = smul.addr %s1431, 8
          %s1433 = scalar_lea.hbm %s12, %s1432
          %s1434 = sshll.u32 %s1408, 4
          %s1435 = int_to_ptr.vmem [resolvable:$true] %s1434
          %s1436 = sshll.u32 %s1433, 4
          %s1437 = int_to_ptr.hbm [resolvable:$true] %s1436
          %1442 = dma.vmem_to_hbm [thread:$0]  %s1435, 512, %s1437, %s1405, 128, 512, 8
        $region76: #{tpu_custom_call.1} parent=63 // pred_fallthru
          _
      $region64: #{tpu_custom_call.1} parent=5 // pred_fallthru
        _
      %p1443 = scmp.le.s32.totalorder 2, %s25
      // Predicated region
      $region77: #{tpu_custom_call.1} parent=5 // pred_check
        %p1444 = pneg %p1443
      $region78: #{tpu_custom_call.1} parent=5 // pred_check_branch
        %1446 = sbr.rel (%p1444) target = $region80
      $region79: #{tpu_custom_call.1} parent=5 // pred_region
        %s1447 = ssub.s32 %s25, 2
        // Predicated region
        $region81: #{tpu_custom_call.1} parent=79 // pred_check
          %p1448 = pneg %p323
        $region82: #{tpu_custom_call.1} parent=79 // pred_check_branch
          %1450 = sbr.rel (%p1448) target = $region84
        $region83: #{tpu_custom_call.1} parent=79 // pred_region
          %s1451 = sand.u32 %s308, 1
          %s1452 = scalar_lea.sflag [#allocation5], %s1451
          %s1453 = sand.u32 %s308, 1
          %s1454 = smul.addr %s1453, 8
          %s1455 = scalar_lea.vmem [#allocation4], %s1454
          %1457 = dma.done %s1452, 128
        $region84: #{tpu_custom_call.1} parent=79 // pred_fallthru
          _
        // Predicated region
        $region85: #{tpu_custom_call.1} parent=79 // pred_check
          %p1458 = pneg %p351
        $region86: #{tpu_custom_call.1} parent=79 // pred_check_branch
          %1460 = sbr.rel (%p1458) target = $region88
        $region87: #{tpu_custom_call.1} parent=79 // pred_region
          %s1461 = sand.u32 %s336, 1
          %s1462 = scalar_lea.sflag [#allocation7], %s1461
          %s1463 = sand.u32 %s336, 1
          %s1464 = smul.addr %s1463, 32
          %s1465 = scalar_lea.vmem [#allocation6], %s1464
          %1467 = dma.done %s1462, 512
        $region88: #{tpu_custom_call.1} parent=79 // pred_fallthru
          _
      $region80: #{tpu_custom_call.1} parent=5 // pred_fallthru
        _
    $region6: #{tpu_custom_call.1} parent=1 // loop_footer
      %s29 = sadd.s32 1, %s25
    $region7: #{tpu_custom_call.1} parent=1 // loop_footer_branch
      %24 = sbr.rel target = $region3
    $region8: #{tpu_custom_call.1} parent=1 // loop_exit
      _
    %1468 = vsyncpa [#allocation5], 1
    %s1469 = scalar_lea.sflag [#allocation5], 1
    %1470 = vsyncpa %s1469, 1
    %1471 = vsyncpa [#allocation7], 1
    %s1472 = scalar_lea.sflag [#allocation7], 1
    %1473 = vsyncpa %s1472, 1

</llo_original>
